<compile_context>
chip_gen: v5e
topology: v5e:2x2
jax: 0.10.0
libtpu: 0.0.40
codegen_flags: <defaults>
</compile_context>

<pallas_src>
import functools

import numpy as np
import jax
import jax.numpy as jnp
from jax.experimental import pallas as pl
from jax.experimental.pallas import tpu as pltpu

# piqa.SSIM defaults
WINDOW_SIZE = 11
SIGMA = 1.5
VALUE_RANGE = 1.0
K1, K2 = 0.01, 0.03
C1 = (K1 * VALUE_RANGE) ** 2
C2 = (K2 * VALUE_RANGE) ** 2

# Optional fast paths (keep OFF until the 1e-4 tolerance is re-validated on
# representative data — see performance-review correctness concerns).
_BF16_MATMUL = False        # demote the two blur matmuls to bf16 (f32 accumulate)
_APPROX_RECIPROCAL = False  # use the EUP vrcp approximation for the SSIM quotient


# ----------------------------------------------------------------------------
# Host-side constant construction
# ----------------------------------------------------------------------------
def _gaussian_kernel_1d(size: int, sigma: float) -> np.ndarray:
    k = np.arange(size, dtype=np.float64) - (size - 1) / 2.0
    k = np.exp(-(k ** 2) / (2.0 * sigma ** 2))
    k = k / k.sum()
    return k.astype(np.float32)


def _conv_matrix(length: int, window: np.ndarray) -> np.ndarray:
    """Matrix A such that (A @ v)[i] = sum_k window[k] * v[i + k] (valid conv)."""
    ws = window.shape[0]
    out = length - ws + 1
    a = np.zeros((out, length), dtype=np.float32)
    for i in range(out):
        a[i, i: i + ws] = window
    return a


def _group_stride(n: int) -> int:
    """Lane stride for one of the 5 packed maps.

    Align to the 128-lane vreg boundary only when the zero padding costs
    <= 25% extra MXU MACs; otherwise keep the groups tightly packed (the
    misaligned slices cost a few XLU shuffles, which is cheaper than the
    padded matmul at small W)."""
    up = -(-n // 128) * 128
    return up if 4 * up <= 5 * n else n


def _build_constants(nb: int, C: int, H: int, W: int):
    """Constants for the fused two-matmul separable blur over NB samples."""
    hout = H - WINDOW_SIZE + 1
    wout = W - WINDOW_SIZE + 1
    g = _gaussian_kernel_1d(WINDOW_SIZE, SIGMA)
    ah = _conv_matrix(H, g)          # (hout, H)   row blur (contracts H)
    awt = _conv_matrix(W, g).T       # (W, wout)   col blur (contracts W)

    nbc = nb * C
    # Block-diagonal row-blur matrix over NB*C (sample, channel) blocks.
    ahb = np.zeros((nbc * hout, nbc * H), dtype=np.float32)
    for i in range(nbc):
        ahb[i * hout:(i + 1) * hout, i * H:(i + 1) * H] = ah

    # Block-diagonal col-blur matrix over the 5 lane groups (x, y, xx, yy, xy),
    # with optional 128-lane alignment of the group strides.
    gs_in = _group_stride(W)
    gs_out = _group_stride(wout)
    awb = np.zeros((5 * gs_in, 5 * gs_out), dtype=np.float32)
    for gi in range(5):
        awb[gi * gs_in: gi * gs_in + W, gi * gs_out: gi * gs_out + wout] = awt

    return hout, wout, gs_in, gs_out, ahb, awb


# ----------------------------------------------------------------------------
# Kernel
# ----------------------------------------------------------------------------
def _ssim_fused_kernel(x_ref, y_ref, ahb_ref, awb_ref, out_ref, *,
                       nb: int, rows_in: int, rows_out: int,
                       w: int, wout: int, gs_in: int, gs_out: int,
                       normalise: bool):
    # x_ref / y_ref blocks: (NB, C*H, W) — NB samples, channels on sublanes.
    # ahb: (NB*C*Hout, NB*C*H) ; awb: (5*gs_in, 5*gs_out)
    if nb == 1:
        x = x_ref[0]
        y = y_ref[0]
    else:
        x = jnp.concatenate([x_ref[b] for b in range(nb)], axis=0)  # (NB*C*H, W)
        y = jnp.concatenate([y_ref[b] for b in range(nb)], axis=0)

    if normalise:
        x = jnp.clip(x, 0.0, 1.0)
        y = jnp.clip(y, 0.0, 1.0)

    # Pack the 5 maps along the lane axis (each group padded to gs_in lanes so
    # the group start can be vreg-aligned when gs_in is a multiple of 128).
    pad = gs_in - w
    if pad:
        zeros = jnp.zeros((nb * rows_in, pad), jnp.float32)
        grp = lambda a: jnp.concatenate([a, zeros], axis=1)
    else:
        grp = lambda a: a
    z = jnp.concatenate([grp(x), grp(y), grp(x * x), grp(y * y), grp(x * y)],
                        axis=1)                                      # (NB*C*H, 5*gs_in)

    md = jnp.bfloat16 if _BF16_MATMUL else jnp.float32
    # Both blur passes as two MXU matmuls (f32 accumulate).
    zr = jnp.dot(ahb_ref[...].astype(md), z.astype(md),
                 preferred_element_type=jnp.float32)                 # (NB*C*Hout, 5*gs_in)
    zc = jnp.dot(zr.astype(md), awb_ref[...].astype(md),
                 preferred_element_type=jnp.float32)                 # (NB*C*Hout, 5*gs_out)

    mu_x = zc[:, 0 * gs_out: 0 * gs_out + wout]
    mu_y = zc[:, 1 * gs_out: 1 * gs_out + wout]
    e_xx = zc[:, 2 * gs_out: 2 * gs_out + wout]
    e_yy = zc[:, 3 * gs_out: 3 * gs_out + wout]
    e_xy = zc[:, 4 * gs_out: 4 * gs_out + wout]

    mu_xx = mu_x * mu_x
    mu_yy = mu_y * mu_y
    mu_xy = mu_x * mu_y
    s_xx = e_xx - mu_xx
    s_yy = e_yy - mu_yy
    s_xy = e_xy - mu_xy

    # Merged luminance*contrast quotient: one reciprocal instead of two divides.
    num = (2.0 * mu_xy + C1) * (2.0 * s_xy + C2)
    den = (mu_xx + mu_yy + C1) * (s_xx + s_yy + C2)
    ss = num * pl.reciprocal(den, approx=_APPROX_RECIPROCAL)         # (NB*C*Hout, wout)

    # Per-sample SSIM means, written as one lane-dense (1, 1, NB) row.
    inv_cnt = 1.0 / float(rows_out * wout)
    means = []
    for b in range(nb):
        s = jnp.sum(ss[b * rows_out:(b + 1) * rows_out, :], keepdims=True)  # (1, 1)
        means.append(s * inv_cnt)
    row = means[0] if nb == 1 else jnp.concatenate(means, axis=1)    # (1, NB)
    out_ref[...] = row.reshape(1, 1, nb)


# ----------------------------------------------------------------------------
# Wrapper
# ----------------------------------------------------------------------------
def _choose_block_batch(N: int, C: int, H: int, W: int) -> int:
    """Samples per grid step (NB)."""
    if N <= 1:
        return 1
    hout = H - WINDOW_SIZE + 1
    nb = max(1, (N + 1) // 2)                         # keep >= 2 grid steps (v7x 2-TC)
    nb = min(nb, max(1, 512 // max(1, C * H)))        # ~512 image rows/step is plenty
    # Keep the block-diagonal row-blur constant under ~4 MiB (it grows as NB^2).
    per_nb2 = 4.0 * (C * hout) * (C * H)
    nb = min(nb, max(1, int((4 * 1024 * 1024 / per_nb2) ** 0.5)))
    # Keep the double-buffered x/y input blocks under ~8 MiB total.
    nb = min(nb, max(1, (8 * 1024 * 1024) // (16 * C * H * W)))
    return max(1, min(nb, N))


def _vmem_limit_bytes(nb, C, H, W, hout, wout, gs_in, gs_out):
    """Rough per-step VMEM footprint; returns None when the default limit is enough."""
    f = 4
    rows_in, rows_out = nb * C * H, nb * C * hout
    est = 0
    est += 2 * 2 * rows_in * W * f                                   # x, y (double-buffered)
    est += 2 * (rows_out * rows_in + (5 * gs_in) * (5 * gs_out)) * f  # blur constants
    est += rows_in * (3 * W + 5 * gs_in) * f                         # xx/yy/xy + packed z
    est += rows_out * 5 * (gs_in + gs_out) * f                       # zr, zc
    est += 16 * rows_out * wout * f                                  # elementwise temps
    est = int(est * 1.5) + (4 << 20)                                 # compiler headroom
    if est <= (16 << 20):       # fits the most conservative default scoped limit (v5e)
        return None
    return int(min(max(est, 32 << 20), 64 << 20))     # cap at v7x physical VMEM


def _ssim_per_sample(x: jax.Array, y: jax.Array, normalise: bool) -> jax.Array:
    """Per-sample mean SSIM.  x, y: (N, C, H, W) float32 -> (N,) float32."""
    N, C, H, W = x.shape
    assert H >= WINDOW_SIZE and W >= WINDOW_SIZE, "spatial dims must be >= window_size"

    nb = _choose_block_batch(N, C, H, W)
    grid = -(-N // nb)
    n_pad = grid * nb
    hout, wout, gs_in, gs_out, ahb_np, awb_np = _build_constants(nb, C, H, W)

    # Flatten channels into the sublane axis outside the kernel (free reshape),
    # pad the batch to a multiple of NB (padded samples are discarded below).
    x3 = x.reshape(N, C * H, W)
    y3 = y.reshape(N, C * H, W)
    if n_pad != N:
        pad_cfg = ((0, n_pad - N), (0, 0), (0, 0))
        x3 = jnp.pad(x3, pad_cfg)
        y3 = jnp.pad(y3, pad_cfg)

    ahb = jnp.asarray(ahb_np)          # (NB*C*hout, NB*C*H)
    awb = jnp.asarray(awb_np)          # (5*gs_in, 5*gs_out)

    kernel = functools.partial(
        _ssim_fused_kernel, nb=nb, rows_in=C * H, rows_out=C * hout,
        w=W, wout=wout, gs_in=gs_in, gs_out=gs_out, normalise=normalise)

    vmem_limit = _vmem_limit_bytes(nb, C, H, W, hout, wout, gs_in, gs_out)

    def call(single_buffer_consts: bool):
        const_kw = ({"pipeline_mode": pl.Buffered(buffer_count=1)}
                    if single_buffer_consts else {})
        grid_spec = pltpu.PrefetchScalarGridSpec(
            num_scalar_prefetch=0,
            grid=(grid,),
            in_specs=[
                pl.BlockSpec((nb, C * H, W), lambda g: (g, 0, 0)),
                pl.BlockSpec((nb, C * H, W), lambda g: (g, 0, 0)),
                # Constant blur matrices: same block every step -> single buffer.
                pl.BlockSpec(tuple(ahb_np.shape), lambda g: (0, 0), **const_kw),
                pl.BlockSpec(tuple(awb_np.shape), lambda g: (0, 0), **const_kw),
            ],
            out_specs=pl.BlockSpec((1, 1, nb), lambda g: (g, 0, 0)),
        )
        return pl.pallas_call(
            kernel,
            out_shape=jax.ShapeDtypeStruct((grid, 1, nb), jnp.float32),
            grid_spec=grid_spec,
            compiler_params=pltpu.CompilerParams(
                dimension_semantics=("parallel",),
                vmem_limit_bytes=vmem_limit),
        )(x3, y3, ahb, awb)

    try:
        per = call(True)
        jax.block_until_ready(per)
    except Exception:
        # Fallback if this JAX build rejects pipeline_mode=pl.Buffered(1)
        # (only costs one extra VMEM buffer per constant matrix).
        per = call(False)

    return per.reshape(grid * nb)[:N]


def ssim_loss(output: jax.Array, target: jax.Array, normalise: bool = False) -> jax.Array:
    """Forward of SSIMLoss (format=None). Returns scalar loss = 1 - SSIM."""
    output = output.astype(jnp.float32)
    target = target.astype(jnp.float32)
    if output.ndim > 4:
        # (N, T, C, H, W): per-time-slice SSIM averaged over T == mean over the
        # folded (N*T) batch, so fold T into the batch -> ONE pallas_call.
        lead = output.shape[0] * output.shape[1]
        output = output.reshape((lead,) + output.shape[2:])
        target = target.reshape((lead,) + target.shape[2:])
    per_sample = _ssim_per_sample(output, target, normalise)
    return 1.0 - per_sample.mean()


# ----------------------------------------------------------------------------
# Pure-JAX reference (same math, no Pallas) for verification
# ----------------------------------------------------------------------------
def _ssim_loss_reference(output, target, normalise=False):
    if normalise:
        output = jnp.clip(output, 0.0, 1.0)
        target = jnp.clip(target, 0.0, 1.0)
    N, C, H, W = output.shape
    g = _gaussian_kernel_1d(WINDOW_SIZE, SIGMA)
    ah = jnp.asarray(_conv_matrix(H, g))
    aw = jnp.asarray(_conv_matrix(W, g))

    def blur(z):  # (N, C, H, W) -> (N, C, Hout, Wout)
        z = jnp.einsum("ph,nchw->ncpw", ah, z)
        return jnp.einsum("qw,ncpw->ncpq", aw, z)

    mu_x, mu_y = blur(output), blur(target)
    mu_xx, mu_yy, mu_xy = mu_x * mu_x, mu_y * mu_y, mu_x * mu_y
    sxx = blur(output * output) - mu_xx
    syy = blur(target * target) - mu_yy
    sxy = blur(output * target) - mu_xy
    cs = (2 * sxy + C2) / (sxx + syy + C2)
    ss = ((2 * mu_xy + C1) / (mu_xx + mu_yy + C1)) * cs
    return 1.0 - ss.mean(axis=(1, 2, 3)).mean()


if __name__ == "__main__":
    key = jax.random.PRNGKey(0)
    kx, ky, kx5, ky5 = jax.random.split(key, 4)

    # 4-D branch: N=2, C=4, H=W=16 (NCHW)
    x = jax.random.uniform(kx, (2, 4, 16, 16), dtype=jnp.float32)
    y = jax.random.uniform(ky, (2, 4, 16, 16), dtype=jnp.float32)

    loss = ssim_loss(x, y, normalise=False)
    jax.block_until_ready(loss)

    ref = _ssim_loss_reference(x, y)
    assert loss.shape == ()
    assert jnp.isfinite(loss)
    assert abs(float(loss) - float(ref)) < 1e-4, (float(loss), float(ref))

    # 5-D branch: (N=2, T=3, C=4, H=W=16), time folded into the batch
    # (NB=3 samples per grid step here -> 2 grid steps instead of 6).
    x5 = jax.random.uniform(kx5, (2, 3, 4, 16, 16), dtype=jnp.float32)
    y5 = jax.random.uniform(ky5, (2, 3, 4, 16, 16), dtype=jnp.float32)
    loss5 = ssim_loss(x5, y5, normalise=True)
    jax.block_until_ready(loss5)
    ref5 = _ssim_loss_reference(x5.reshape(6, 4, 16, 16),
                                y5.reshape(6, 4, 16, 16), normalise=True)
    assert jnp.isfinite(loss5)
    assert abs(float(loss5) - float(ref5)) < 1e-4, (float(loss5), float(ref5))

    print("KERNEL_OK")
</pallas_src>

<mosaic_0001>
module attributes {stable_mosaic.version = 11 : i64} {
  func.func @_ssim_fused_kernel(%arg0: i32, %arg1: memref<1x64x16xf32, #tpu.memory_space<vmem>>, %arg2: memref<1x64x16xf32, #tpu.memory_space<vmem>>, %arg3: memref<24x64xf32, #tpu.memory_space<vmem>>, %arg4: memref<80x30xf32, #tpu.memory_space<vmem>>, %arg5: memref<1x1x1xf32, #tpu.memory_space<vmem>>) attributes {dimension_semantics = [#tpu.dimension_semantics<parallel>], iteration_bounds = array<i64: 2>, scalar_prefetch = 0 : i64, scratch_operands = 0 : i64, tpu.core_type = #tpu.core_type<tc>, window_params = [{transform_indices = @transform_0, window_bounds = array<i64: 1, 64, 16>}, {transform_indices = @transform_1, window_bounds = array<i64: 1, 64, 16>}, {pipeline_mode = #tpu.pipeline_mode<synchronous>, transform_indices = @transform_2, window_bounds = array<i64: 24, 64>}, {pipeline_mode = #tpu.pipeline_mode<synchronous>, transform_indices = @transform_3, window_bounds = array<i64: 80, 30>}, {transform_indices = @transform_4, window_bounds = array<i64: 1, 1, 1>}]} {
    %c0 = arith.constant 0 : index
    %c0_0 = arith.constant 0 : index
    %c0_1 = arith.constant 0 : index
    %0 = vector.load %arg1[%c0, %c0_0, %c0_1] : memref<1x64x16xf32, #tpu.memory_space<vmem>>, vector<1x64x16xf32>
    %1 = vector.shape_cast %0 : vector<1x64x16xf32> to vector<64x16xf32>
    %c0_2 = arith.constant 0 : index
    %c0_3 = arith.constant 0 : index
    %c0_4 = arith.constant 0 : index
    %2 = vector.load %arg2[%c0_2, %c0_3, %c0_4] : memref<1x64x16xf32, #tpu.memory_space<vmem>>, vector<1x64x16xf32>
    %3 = vector.shape_cast %2 : vector<1x64x16xf32> to vector<64x16xf32>
    %4 = arith.mulf %1, %1 : vector<64x16xf32>
    %5 = arith.mulf %3, %3 : vector<64x16xf32>
    %6 = arith.mulf %1, %3 : vector<64x16xf32>
    %7 = tpu.concatenate %1, %3, %4, %5, %6 in 1 : vector<64x16xf32>, vector<64x16xf32>, vector<64x16xf32>, vector<64x16xf32>, vector<64x16xf32> -> vector<64x80xf32>
    %c0_5 = arith.constant 0 : index
    %c0_6 = arith.constant 0 : index
    %8 = vector.load %arg3[%c0_5, %c0_6] : memref<24x64xf32, #tpu.memory_space<vmem>>, vector<24x64xf32>
    %cst = arith.constant dense<0.000000e+00> : vector<24x80xf32>
    %9 = tpu.matmul %8, %7, %cst {dimension_numbers = #tpu.dot_dimension_numbers<[1], [0], [0], [1], [0, 0, 1, 1], [], []>} : vector<24x64xf32>, vector<64x80xf32>, vector<24x80xf32> -> vector<24x80xf32>
    %c0_7 = arith.constant 0 : index
    %c0_8 = arith.constant 0 : index
    %10 = vector.load %arg4[%c0_7, %c0_8] : memref<80x30xf32, #tpu.memory_space<vmem>>, vector<80x30xf32>
    %cst_9 = arith.constant dense<0.000000e+00> : vector<24x30xf32>
    %11 = tpu.matmul %9, %10, %cst_9 {dimension_numbers = #tpu.dot_dimension_numbers<[1], [0], [0], [1], [0, 0, 1, 1], [], []>} : vector<24x80xf32>, vector<80x30xf32>, vector<24x30xf32> -> vector<24x30xf32>
    %12 = vector.extract_strided_slice %11 {offsets = [0, 0], sizes = [24, 6], strides = [1, 1]} : vector<24x30xf32> to vector<24x6xf32>
    %13 = vector.extract_strided_slice %11 {offsets = [0, 6], sizes = [24, 6], strides = [1, 1]} : vector<24x30xf32> to vector<24x6xf32>
    %14 = vector.extract_strided_slice %11 {offsets = [0, 12], sizes = [24, 6], strides = [1, 1]} : vector<24x30xf32> to vector<24x6xf32>
    %15 = vector.extract_strided_slice %11 {offsets = [0, 18], sizes = [24, 6], strides = [1, 1]} : vector<24x30xf32> to vector<24x6xf32>
    %16 = vector.extract_strided_slice %11 {offsets = [0, 24], sizes = [24, 6], strides = [1, 1]} : vector<24x30xf32> to vector<24x6xf32>
    %17 = arith.mulf %12, %12 : vector<24x6xf32>
    %18 = arith.mulf %13, %13 : vector<24x6xf32>
    %19 = arith.mulf %12, %13 : vector<24x6xf32>
    %20 = arith.subf %14, %17 : vector<24x6xf32>
    %21 = arith.subf %15, %18 : vector<24x6xf32>
    %22 = arith.subf %16, %19 : vector<24x6xf32>
    %cst_10 = arith.constant 2.000000e+00 : f32
    %23 = vector.broadcast %cst_10 : f32 to vector<24x6xf32>
    %24 = arith.mulf %23, %19 : vector<24x6xf32>
    %cst_11 = arith.constant 9.99999974E-5 : f32
    %25 = vector.broadcast %cst_11 : f32 to vector<24x6xf32>
    %26 = arith.addf %24, %25 : vector<24x6xf32>
    %cst_12 = arith.constant 2.000000e+00 : f32
    %27 = vector.broadcast %cst_12 : f32 to vector<24x6xf32>
    %28 = arith.mulf %27, %22 : vector<24x6xf32>
    %cst_13 = arith.constant 8.99999984E-4 : f32
    %29 = vector.broadcast %cst_13 : f32 to vector<24x6xf32>
    %30 = arith.addf %28, %29 : vector<24x6xf32>
    %31 = arith.mulf %26, %30 : vector<24x6xf32>
    %32 = arith.addf %17, %18 : vector<24x6xf32>
    %cst_14 = arith.constant 9.99999974E-5 : f32
    %33 = vector.broadcast %cst_14 : f32 to vector<24x6xf32>
    %34 = arith.addf %32, %33 : vector<24x6xf32>
    %35 = arith.addf %20, %21 : vector<24x6xf32>
    %cst_15 = arith.constant 8.99999984E-4 : f32
    %36 = vector.broadcast %cst_15 : f32 to vector<24x6xf32>
    %37 = arith.addf %35, %36 : vector<24x6xf32>
    %38 = arith.mulf %34, %37 : vector<24x6xf32>
    %39 = tpu.reciprocal %38 : vector<24x6xf32> -> vector<24x6xf32>
    %40 = arith.mulf %31, %39 : vector<24x6xf32>
    %41 = vector.shape_cast %40 : vector<24x6xf32> to vector<1x24x6xf32>
    %cst_16 = arith.constant dense<0.000000e+00> : vector<1xf32>
    %42 = vector.multi_reduction <add>, %41, %cst_16 [1, 2] : vector<1x24x6xf32> to vector<1xf32>
    %43 = vector.shape_cast %42 : vector<1xf32> to vector<1x1x1xf32>
    %44 = vector.extract %43[0, 0, 0] : f32 from vector<1x1x1xf32>
    %45 = vector.broadcast %44 : f32 to vector<1x1xf32>
    %cst_17 = arith.constant 0.0069444445 : f32
    %46 = vector.broadcast %cst_17 : f32 to vector<1x1xf32>
    %47 = arith.mulf %45, %46 : vector<1x1xf32>
    %48 = vector.shape_cast %47 : vector<1x1xf32> to vector<1x1x1xf32>
    %c0_18 = arith.constant 0 : index
    %c0_19 = arith.constant 0 : index
    %c0_20 = arith.constant 0 : index
    %49 = vector.load %arg5[%c0_18, %c0_19, %c0_20] : memref<1x1x1xf32, #tpu.memory_space<vmem>>, vector<1x1x1xf32>
    tpu.vector_store %arg5[%c0_18, %c0_19, %c0_20], %48 {strides = array<i32>} : memref<1x1x1xf32, #tpu.memory_space<vmem>>, vector<1x1x1xf32>,
    return
  }
  func.func @transform_0(%arg0: i32) -> (i32, i32, i32) {
    %c0_i32 = arith.constant 0 : i32
    %c0_i32_0 = arith.constant 0 : i32
    %c0_i32_1 = arith.constant 0 : i32
    return %arg0, %c0_i32, %c0_i32_0 : i32, i32, i32
  }
  func.func @transform_1(%arg0: i32) -> (i32, i32, i32) {
    %c0_i32 = arith.constant 0 : i32
    %c0_i32_0 = arith.constant 0 : i32
    %c0_i32_1 = arith.constant 0 : i32
    return %arg0, %c0_i32, %c0_i32_0 : i32, i32, i32
  }
  func.func @transform_2(%arg0: i32) -> (i32, i32) {
    %c0_i32 = arith.constant 0 : i32
    %c0_i32_0 = arith.constant 0 : i32
    %c0_i32_1 = arith.constant 0 : i32
    return %c0_i32, %c0_i32_0 : i32, i32
  }
  func.func @transform_3(%arg0: i32) -> (i32, i32) {
    %c0_i32 = arith.constant 0 : i32
    %c0_i32_0 = arith.constant 0 : i32
    %c0_i32_1 = arith.constant 0 : i32
    return %c0_i32, %c0_i32_0 : i32, i32
  }
  func.func @transform_4(%arg0: i32) -> (i32, i32, i32) {
    %c0_i32 = arith.constant 0 : i32
    %c0_i32_0 = arith.constant 0 : i32
    %c0_i32_1 = arith.constant 0 : i32
    return %arg0, %c0_i32, %c0_i32_0 : i32, i32, i32
  }
}

module attributes {stable_mosaic.version = 11 : i64} {
  func.func @_ssim_fused_kernel(%arg0: i32, %arg1: memref<1x64x16xf32, #tpu.memory_space<vmem>>, %arg2: memref<1x64x16xf32, #tpu.memory_space<vmem>>, %arg3: memref<24x64xf32, #tpu.memory_space<vmem>>, %arg4: memref<80x30xf32, #tpu.memory_space<vmem>>, %arg5: memref<1x1x1xf32, #tpu.memory_space<vmem>>) attributes {dimension_semantics = [#tpu.dimension_semantics<parallel>], iteration_bounds = array<i64: 2>, scalar_prefetch = 0 : i64, scratch_operands = 0 : i64, tpu.core_type = #tpu.core_type<tc>, window_params = [{transform_indices = @transform_0, window_bounds = array<i64: 1, 64, 16>}, {transform_indices = @transform_1, window_bounds = array<i64: 1, 64, 16>}, {pipeline_mode = #tpu.pipeline_mode<synchronous>, transform_indices = @transform_2, window_bounds = array<i64: 24, 64>}, {pipeline_mode = #tpu.pipeline_mode<synchronous>, transform_indices = @transform_3, window_bounds = array<i64: 80, 30>}, {transform_indices = @transform_4, window_bounds = array<i64: 1, 1, 1>}]} {
    %c0 = arith.constant 0 : index
    %c0_0 = arith.constant 0 : index
    %c0_1 = arith.constant 0 : index
    %0 = vector.load %arg1[%c0, %c0_0, %c0_1] : memref<1x64x16xf32, #tpu.memory_space<vmem>>, vector<1x64x16xf32>
    %1 = vector.shape_cast %0 : vector<1x64x16xf32> to vector<64x16xf32>
    %c0_2 = arith.constant 0 : index
    %c0_3 = arith.constant 0 : index
    %c0_4 = arith.constant 0 : index
    %2 = vector.load %arg2[%c0_2, %c0_3, %c0_4] : memref<1x64x16xf32, #tpu.memory_space<vmem>>, vector<1x64x16xf32>
    %3 = vector.shape_cast %2 : vector<1x64x16xf32> to vector<64x16xf32>
    %4 = arith.mulf %1, %1 : vector<64x16xf32>
    %5 = arith.mulf %3, %3 : vector<64x16xf32>
    %6 = arith.mulf %1, %3 : vector<64x16xf32>
    %7 = tpu.concatenate %1, %3, %4, %5, %6 in 1 : vector<64x16xf32>, vector<64x16xf32>, vector<64x16xf32>, vector<64x16xf32>, vector<64x16xf32> -> vector<64x80xf32>
    %c0_5 = arith.constant 0 : index
    %c0_6 = arith.constant 0 : index
    %8 = vector.load %arg3[%c0_5, %c0_6] : memref<24x64xf32, #tpu.memory_space<vmem>>, vector<24x64xf32>
    %cst = arith.constant dense<0.000000e+00> : vector<24x80xf32>
    %9 = tpu.matmul %8, %7, %cst {dimension_numbers = #tpu.dot_dimension_numbers<[1], [0], [0], [1], [0, 0, 1, 1], [], []>} : vector<24x64xf32>, vector<64x80xf32>, vector<24x80xf32> -> vector<24x80xf32>
    %c0_7 = arith.constant 0 : index
    %c0_8 = arith.constant 0 : index
    %10 = vector.load %arg4[%c0_7, %c0_8] : memref<80x30xf32, #tpu.memory_space<vmem>>, vector<80x30xf32>
    %cst_9 = arith.constant dense<0.000000e+00> : vector<24x30xf32>
    %11 = tpu.matmul %9, %10, %cst_9 {dimension_numbers = #tpu.dot_dimension_numbers<[1], [0], [0], [1], [0, 0, 1, 1], [], []>} : vector<24x80xf32>, vector<80x30xf32>, vector<24x30xf32> -> vector<24x30xf32>
    %12 = vector.extract_strided_slice %11 {offsets = [0, 0], sizes = [24, 6], strides = [1, 1]} : vector<24x30xf32> to vector<24x6xf32>
    %13 = vector.extract_strided_slice %11 {offsets = [0, 6], sizes = [24, 6], strides = [1, 1]} : vector<24x30xf32> to vector<24x6xf32>
    %14 = vector.extract_strided_slice %11 {offsets = [0, 12], sizes = [24, 6], strides = [1, 1]} : vector<24x30xf32> to vector<24x6xf32>
    %15 = vector.extract_strided_slice %11 {offsets = [0, 18], sizes = [24, 6], strides = [1, 1]} : vector<24x30xf32> to vector<24x6xf32>
    %16 = vector.extract_strided_slice %11 {offsets = [0, 24], sizes = [24, 6], strides = [1, 1]} : vector<24x30xf32> to vector<24x6xf32>
    %17 = arith.mulf %12, %12 : vector<24x6xf32>
    %18 = arith.mulf %13, %13 : vector<24x6xf32>
    %19 = arith.mulf %12, %13 : vector<24x6xf32>
    %20 = arith.subf %14, %17 : vector<24x6xf32>
    %21 = arith.subf %15, %18 : vector<24x6xf32>
    %22 = arith.subf %16, %19 : vector<24x6xf32>
    %cst_10 = arith.constant 2.000000e+00 : f32
    %23 = vector.broadcast %cst_10 : f32 to vector<24x6xf32>
    %24 = arith.mulf %23, %19 : vector<24x6xf32>
    %cst_11 = arith.constant 9.99999974E-5 : f32
    %25 = vector.broadcast %cst_11 : f32 to vector<24x6xf32>
    %26 = arith.addf %24, %25 : vector<24x6xf32>
    %cst_12 = arith.constant 2.000000e+00 : f32
    %27 = vector.broadcast %cst_12 : f32 to vector<24x6xf32>
    %28 = arith.mulf %27, %22 : vector<24x6xf32>
    %cst_13 = arith.constant 8.99999984E-4 : f32
    %29 = vector.broadcast %cst_13 : f32 to vector<24x6xf32>
    %30 = arith.addf %28, %29 : vector<24x6xf32>
    %31 = arith.mulf %26, %30 : vector<24x6xf32>
    %32 = arith.addf %17, %18 : vector<24x6xf32>
    %cst_14 = arith.constant 9.99999974E-5 : f32
    %33 = vector.broadcast %cst_14 : f32 to vector<24x6xf32>
    %34 = arith.addf %32, %33 : vector<24x6xf32>
    %35 = arith.addf %20, %21 : vector<24x6xf32>
    %cst_15 = arith.constant 8.99999984E-4 : f32
    %36 = vector.broadcast %cst_15 : f32 to vector<24x6xf32>
    %37 = arith.addf %35, %36 : vector<24x6xf32>
    %38 = arith.mulf %34, %37 : vector<24x6xf32>
    %39 = tpu.reciprocal %38 : vector<24x6xf32> -> vector<24x6xf32>
    %40 = arith.mulf %31, %39 : vector<24x6xf32>
    %41 = vector.shape_cast %40 : vector<24x6xf32> to vector<1x24x6xf32>
    %cst_16 = arith.constant dense<0.000000e+00> : vector<1xf32>
    %42 = vector.multi_reduction <add>, %41, %cst_16 [1, 2] : vector<1x24x6xf32> to vector<1xf32>
    %43 = vector.shape_cast %42 : vector<1xf32> to vector<1x1x1xf32>
    %44 = vector.extract %43[0, 0, 0] : f32 from vector<1x1x1xf32>
    %45 = vector.broadcast %44 : f32 to vector<1x1xf32>
    %cst_17 = arith.constant 0.0069444445 : f32
    %46 = vector.broadcast %cst_17 : f32 to vector<1x1xf32>
    %47 = arith.mulf %45, %46 : vector<1x1xf32>
    %48 = vector.shape_cast %47 : vector<1x1xf32> to vector<1x1x1xf32>
    %c0_18 = arith.constant 0 : index
    %c0_19 = arith.constant 0 : index
    %c0_20 = arith.constant 0 : index
    %49 = vector.load %arg5[%c0_18, %c0_19, %c0_20] : memref<1x1x1xf32, #tpu.memory_space<vmem>>, vector<1x1x1xf32>
    tpu.vector_store %arg5[%c0_18, %c0_19, %c0_20], %48 {strides = array<i32>} : memref<1x1x1xf32, #tpu.memory_space<vmem>>, vector<1x1x1xf32>,
    return
  }
  func.func @transform_0(%arg0: i32) -> (i32, i32, i32) {
    %c0_i32 = arith.constant 0 : i32
    %c0_i32_0 = arith.constant 0 : i32
    %c0_i32_1 = arith.constant 0 : i32
    return %arg0, %c0_i32, %c0_i32_0 : i32, i32, i32
  }
  func.func @transform_1(%arg0: i32) -> (i32, i32, i32) {
    %c0_i32 = arith.constant 0 : i32
    %c0_i32_0 = arith.constant 0 : i32
    %c0_i32_1 = arith.constant 0 : i32
    return %arg0, %c0_i32, %c0_i32_0 : i32, i32, i32
  }
  func.func @transform_2(%arg0: i32) -> (i32, i32) {
    %c0_i32 = arith.constant 0 : i32
    %c0_i32_0 = arith.constant 0 : i32
    %c0_i32_1 = arith.constant 0 : i32
    return %c0_i32, %c0_i32_0 : i32, i32
  }
  func.func @transform_3(%arg0: i32) -> (i32, i32) {
    %c0_i32 = arith.constant 0 : i32
    %c0_i32_0 = arith.constant 0 : i32
    %c0_i32_1 = arith.constant 0 : i32
    return %c0_i32, %c0_i32_0 : i32, i32
  }
  func.func @transform_4(%arg0: i32) -> (i32, i32, i32) {
    %c0_i32 = arith.constant 0 : i32
    %c0_i32_0 = arith.constant 0 : i32
    %c0_i32_1 = arith.constant 0 : i32
    return %arg0, %c0_i32, %c0_i32_0 : i32, i32, i32
  }
}

</mosaic_0001>

<llo_original>
// kernel: tpu_custom_call.1
$region0: #{tpu_custom_call.1}
  #allocation0 [shape = 'u32[]', space=smem, size = 0x4, offset = 0x4, fixed_abs, tag = 'smem constant byte address 0x4 - core index']
  #allocation1 [shape = 'u32[72,128]{1,0:T(1,128)}', space=vmem, size = 0x9000, scoped, tag = 'internal scratch']
  %s0 = inlined_call_operand.vmem [shape: f32[2,64,16], index: 0, kind: input, shape index: {}]
  %s1 = inlined_call_operand.vmem [shape: f32[2,64,16], index: 1, kind: input, shape index: {}]
  %s2 = inlined_call_operand.vmem [shape: f32[24,64], index: 2, kind: input, shape index: {}]
  %s3 = inlined_call_operand.vmem [shape: f32[80,30], index: 3, kind: input, shape index: {}]
  %s4 = inlined_call_operand.vmem [shape: f32[2,1,1], index: 4, kind: output, shape index: {}]
  %s5 = sld [smem:[#allocation0]]
  $region49: #{tpu_custom_call.1} parent=0
    _
  %s7 = ssub.s32 1, %s5
  %s8 = scalar_select 0, %s7, %s5
  loop: start=0, step=1, limit=4
  $region2: #{tpu_custom_call.1} parent=0 // loop_pre_header
    _
  $region3: #{tpu_custom_call.1} parent=0 // loop_header
    %s10 = sphi 0, %s14
    %p11 = scmp.ge.s32.totalorder %s10, 4
    %s20 = sphi 0, %s22
    %s23 = sphi 0, %s20
    %s24 = sphi 0, %s23
    %s40 = sphi 0, %s24
    %s46 = sphi 0, %s48
    %s49 = sphi 0, %s46
    %s50 = sphi 0, %s49
    %s66 = sphi 0, %s50
    %s70 = sphi 0, %s70
    %s72 = sphi 0, %s70
    %s73 = sphi 0, %s72
    %s87 = sphi 0, %s73
    %s91 = sphi 0, %s91
    %s93 = sphi 0, %s91
    %s94 = sphi 0, %s93
    %s108 = sphi 0, %s94
    %s114 = sphi 0, %s116
    %s117 = sphi 0, %s114
    %s118 = sphi 0, %s117
    %s134 = sphi 0, %s118
  $region4: #{tpu_custom_call.1} parent=0 // loop_header_branch
    %13 = sbr.rel (%p11) target = $region8
  $region5: #{tpu_custom_call.1} parent=0 // loop_body
    %s15 = ssub.s32 %s10, 1
    %s16 = ssub.s32 %s10, 2
    %s17 = sadd.s32 %s10, 1
    %s18 = ssub.s32 %s10, %s17
    %p19 = scmp.eq.s32.totalorder %s18, 0
    %s21 = sadd.s32 %s20, 1
    %s22 = scalar_select %p19, %s20, %s21
    %p25 = pneg %p19
    %p26 = scmp.eq.s32.totalorder %s10, 1
    %p27 = por %p25, %p26
    %p28 = scmp.ne.s32.totalorder %s20, %s23
    %p29 = scmp.eq.s32.totalorder %s10, 0
    %p30 = por %p28, %p29
    %p31 = scmp.ne.s32.totalorder %s20, %s23
    %p32 = scmp.eq.s32.totalorder %s15, 1
    %p33 = por %p31, %p32
    %p34 = scmp.ne.s32.totalorder %s23, %s24
    %p35 = scmp.eq.s32.totalorder %s15, 0
    %p36 = por %p34, %p35
    %p37 = scmp.ne.s32.totalorder %s23, %s24
    %p38 = scmp.eq.s32.totalorder %s16, 1
    %p39 = por %p37, %p38
    %p41 = scmp.ne.s32.totalorder %s24, %s40
    %p42 = scmp.eq.s32.totalorder %s16, 0
    %p43 = por %p41, %p42
    %s44 = ssub.s32 %s10, %s17
    %p45 = scmp.eq.s32.totalorder %s44, 0
    %s47 = sadd.s32 %s46, 1
    %s48 = scalar_select %p45, %s46, %s47
    %p51 = pneg %p45
    %p52 = scmp.eq.s32.totalorder %s10, 1
    %p53 = por %p51, %p52
    %p54 = scmp.ne.s32.totalorder %s46, %s49
    %p55 = scmp.eq.s32.totalorder %s10, 0
    %p56 = por %p54, %p55
    %p57 = scmp.ne.s32.totalorder %s46, %s49
    %p58 = scmp.eq.s32.totalorder %s15, 1
    %p59 = por %p57, %p58
    %p60 = scmp.ne.s32.totalorder %s49, %s50
    %p61 = scmp.eq.s32.totalorder %s15, 0
    %p62 = por %p60, %p61
    %p63 = scmp.ne.s32.totalorder %s49, %s50
    %p64 = scmp.eq.s32.totalorder %s16, 1
    %p65 = por %p63, %p64
    %p67 = scmp.ne.s32.totalorder %s50, %s66
    %p68 = scmp.eq.s32.totalorder %s16, 0
    %p69 = por %p67, %p68
    %s71 = sadd.s32 %s70, 1
    %p74 = scmp.eq.s32.totalorder %s10, 1
    %p75 = scmp.ne.s32.totalorder %s70, %s72
    %p76 = scmp.eq.s32.totalorder %s10, 0
    %p77 = por %p75, %p76
    %p78 = scmp.ne.s32.totalorder %s70, %s72
    %p79 = scmp.eq.s32.totalorder %s15, 1
    %p80 = por %p78, %p79
    %p81 = scmp.ne.s32.totalorder %s72, %s73
    %p82 = scmp.eq.s32.totalorder %s15, 0
    %p83 = por %p81, %p82
    %p84 = scmp.ne.s32.totalorder %s72, %s73
    %p85 = scmp.eq.s32.totalorder %s16, 1
    %p86 = por %p84, %p85
    %p88 = scmp.ne.s32.totalorder %s73, %s87
    %p89 = scmp.eq.s32.totalorder %s16, 0
    %p90 = por %p88, %p89
    %s92 = sadd.s32 %s91, 1
    %p95 = scmp.eq.s32.totalorder %s10, 1
    %p96 = scmp.ne.s32.totalorder %s91, %s93
    %p97 = scmp.eq.s32.totalorder %s10, 0
    %p98 = por %p96, %p97
    %p99 = scmp.ne.s32.totalorder %s91, %s93
    %p100 = scmp.eq.s32.totalorder %s15, 1
    %p101 = por %p99, %p100
    %p102 = scmp.ne.s32.totalorder %s93, %s94
    %p103 = scmp.eq.s32.totalorder %s15, 0
    %p104 = por %p102, %p103
    %p105 = scmp.ne.s32.totalorder %s93, %s94
    %p106 = scmp.eq.s32.totalorder %s16, 1
    %p107 = por %p105, %p106
    %p109 = scmp.ne.s32.totalorder %s94, %s108
    %p110 = scmp.eq.s32.totalorder %s16, 0
    %p111 = por %p109, %p110
    %s112 = ssub.s32 %s10, %s17
    %p113 = scmp.eq.s32.totalorder %s112, 0
    %s115 = sadd.s32 %s114, 1
    %s116 = scalar_select %p113, %s114, %s115
    %p119 = pneg %p113
    %p120 = scmp.eq.s32.totalorder %s10, 1
    %p121 = por %p119, %p120
    %p122 = scmp.ne.s32.totalorder %s114, %s117
    %p123 = scmp.eq.s32.totalorder %s10, 0
    %p124 = por %p122, %p123
    %p125 = scmp.ne.s32.totalorder %s114, %s117
    %p126 = scmp.eq.s32.totalorder %s15, 1
    %p127 = por %p125, %p126
    %p128 = scmp.ne.s32.totalorder %s117, %s118
    %p129 = scmp.eq.s32.totalorder %s15, 0
    %p130 = por %p128, %p129
    %p131 = scmp.ne.s32.totalorder %s117, %s118
    %p132 = scmp.eq.s32.totalorder %s16, 1
    %p133 = por %p131, %p132
    %p135 = scmp.ne.s32.totalorder %s118, %s134
    %p136 = scmp.eq.s32.totalorder %s16, 0
    %p137 = por %p135, %p136
    %p138 = scmp.le.s32.totalorder 1, %s10
    %p139 = scmp.lt.s32.totalorder %s10, 3
    %p140 = pnand %p138, %p139
    %p141 = pneg %p140
    // Predicated region
    $region9: #{tpu_custom_call.1} parent=5 // pred_check
      _
    $region10: #{tpu_custom_call.1} parent=5 // pred_check_branch
      %143 = sbr.rel (%p140) target = $region12
    $region11: #{tpu_custom_call.1} parent=5 // pred_region
      %s144 = ssub.s32 %s10, 1
      // Predicated region
      $region13: #{tpu_custom_call.1} parent=11 // pred_check
        %p145 = pneg %p83
      $region14: #{tpu_custom_call.1} parent=11 // pred_check_branch
        %147 = sbr.rel (%p145) target = $region16
      $region15: #{tpu_custom_call.1} parent=11 // pred_region
        _
      $region16: #{tpu_custom_call.1} parent=11 // pred_fallthru
        _
      // Predicated region
      $region17: #{tpu_custom_call.1} parent=11 // pred_check
        %p148 = pneg %p104
      $region18: #{tpu_custom_call.1} parent=11 // pred_check_branch
        %150 = sbr.rel (%p148) target = $region20
      $region19: #{tpu_custom_call.1} parent=11 // pred_region
        _
      $region20: #{tpu_custom_call.1} parent=11 // pred_fallthru
        _
    $region12: #{tpu_custom_call.1} parent=5 // pred_fallthru
      _
    %p151 = scmp.lt.s32.totalorder %s10, 2
    // Predicated region
    $region21: #{tpu_custom_call.1} parent=5 // pred_check
      %p152 = pneg %p151
    $region22: #{tpu_custom_call.1} parent=5 // pred_check_branch
      %154 = sbr.rel (%p152) target = $region24
    $region23: #{tpu_custom_call.1} parent=5 // pred_region
      // Predicated region
      $region25: #{tpu_custom_call.1} parent=23 // pred_check
        %p155 = pneg %p30
      $region26: #{tpu_custom_call.1} parent=23 // pred_check_branch
        %157 = sbr.rel (%p155) target = $region28
      $region27: #{tpu_custom_call.1} parent=23 // pred_region
        %p158 = scmp.lt.s32.totalorder %s10, 1
        %s159 = scalar_select %p158, %s10, 1
        %s160 = smul.addr %s159, 8
        %s161 = smul.addr %s160, 8
        %s162 = scalar_lea.vmem %s0, %s161
      $region28: #{tpu_custom_call.1} parent=23 // pred_fallthru
        _
      // Predicated region
      $region29: #{tpu_custom_call.1} parent=23 // pred_check
        %p163 = pneg %p56
      $region30: #{tpu_custom_call.1} parent=23 // pred_check_branch
        %165 = sbr.rel (%p163) target = $region32
      $region31: #{tpu_custom_call.1} parent=23 // pred_region
        %p166 = scmp.lt.s32.totalorder %s10, 1
        %s167 = scalar_select %p166, %s10, 1
        %s168 = smul.addr %s167, 8
        %s169 = smul.addr %s168, 8
        %s170 = scalar_lea.vmem %s1, %s169
      $region32: #{tpu_custom_call.1} parent=23 // pred_fallthru
        _
    $region24: #{tpu_custom_call.1} parent=5 // pred_fallthru
      _
    %p171 = scmp.le.s32.totalorder 1, %s10
    %p172 = scmp.lt.s32.totalorder %s10, 3
    %p173 = pnand %p171, %p172
    %p174 = pneg %p173
    // Predicated region
    $region33: #{tpu_custom_call.1} parent=5 // pred_check
      _
    $region34: #{tpu_custom_call.1} parent=5 // pred_check_branch
      %176 = sbr.rel (%p173) target = $region36
    $region35: #{tpu_custom_call.1} parent=5 // pred_region
      %s177 = ssub.s32 %s10, 1
      %p178 = scmp.lt.s32.totalorder %s15, 1
      %s179 = scalar_select %p178, %s15, 1
      %s180 = smul.addr %s179, 8
      %s181 = smul.addr %s180, 8
      %s182 = scalar_lea.vmem %s0, %s181
      %p183 = pneg %p36
      %p184 = pneg %p33
      %p185 = scmp.lt.s32.totalorder %s15, 1
      %s186 = scalar_select %p185, %s15, 1
      %s187 = smul.addr %s186, 8
      %s188 = smul.addr %s187, 8
      %s189 = scalar_lea.vmem %s1, %s188
      %p190 = pneg %p62
      %p191 = pneg %p59
      %p192 = pneg %p83
      %p193 = pneg %p80
      %p194 = pneg %p104
      %p195 = pneg %p101
      %p196 = pneg %p130
      %p197 = pneg %p127
      %p198 = scmp.lt.s32.totalorder %s15, 1
      %s199 = scalar_select %p198, %s15, 1
      %s200 = scalar_lea.vmem %s4, %s199
      %p201 = scmp.lt.s32.totalorder %s15, 1
      %s202 = scalar_select %p201, %s15, 1
      %s203 = smul.addr %s202, 8
      %s204 = smul.addr %s203, 8
      %s205 = scalar_lea.vmem %s0, %s204
      %p206 = scmp.lt.s32.totalorder %s15, 1
      %s207 = scalar_select %p206, %s15, 1
      %s208 = smul.addr %s207, 8
      %s209 = smul.addr %s208, 8
      %s210 = scalar_lea.vmem %s1, %s209
      %p211 = scmp.lt.s32.totalorder %s15, 1
      %s212 = scalar_select %p211, %s15, 1
      %s213 = scalar_lea.vmem %s4, %s212
      %v214 = vld [vmem:[%s205] sm:$0xff]
      %v215 = vld [vmem:[%s205 + $0x8] sm:$0xff]
      %v216 = vld [vmem:[%s205 + $0x10] sm:$0xff]
      %v217 = vld [vmem:[%s205 + $0x18] sm:$0xff]
      %v218 = vld [vmem:[%s205 + $0x20] sm:$0xff]
      %v219 = vld [vmem:[%s205 + $0x28] sm:$0xff]
      %v220 = vld [vmem:[%s205 + $0x30] sm:$0xff]
      %v221 = vld [vmem:[%s205 + $0x38] sm:$0xff]
      %v222 = vld [vmem:[%s210] sm:$0xff]
      %v223 = vld [vmem:[%s210 + $0x8] sm:$0xff]
      %v224 = vld [vmem:[%s210 + $0x10] sm:$0xff]
      %v225 = vld [vmem:[%s210 + $0x18] sm:$0xff]
      %v226 = vld [vmem:[%s210 + $0x20] sm:$0xff]
      %v227 = vld [vmem:[%s210 + $0x28] sm:$0xff]
      %v228 = vld [vmem:[%s210 + $0x30] sm:$0xff]
      %v229 = vld [vmem:[%s210 + $0x38] sm:$0xff]
      %v230 = vmul.f32 %v214, %v214
      %v231 = vmul.f32 %v215, %v215
      %v232 = vmul.f32 %v216, %v216
      %v233 = vmul.f32 %v217, %v217
      %v234 = vmul.f32 %v218, %v218
      %v235 = vmul.f32 %v219, %v219
      %v236 = vmul.f32 %v220, %v220
      %v237 = vmul.f32 %v221, %v221
      %v238 = vmul.f32 %v222, %v222
      %v239 = vmul.f32 %v223, %v223
      %v240 = vmul.f32 %v224, %v224
      %v241 = vmul.f32 %v225, %v225
      %v242 = vmul.f32 %v226, %v226
      %v243 = vmul.f32 %v227, %v227
      %v244 = vmul.f32 %v228, %v228
      %v245 = vmul.f32 %v229, %v229
      %v246 = vmul.f32 %v214, %v222
      %v247 = vmul.f32 %v215, %v223
      %v248 = vmul.f32 %v216, %v224
      %v249 = vmul.f32 %v217, %v225
      %v250 = vmul.f32 %v218, %v226
      %v251 = vmul.f32 %v219, %v227
      %v252 = vmul.f32 %v220, %v228
      %v253 = vmul.f32 %v221, %v229
      %262 = vrot.lane.b32.xlu0 %v222, 16
      %v263 = vpop.permute.xlu0 %262
      %264 = vrot.lane.b32.xlu0 %v223, 16
      %v265 = vpop.permute.xlu0 %264
      %266 = vrot.lane.b32.xlu0 %v224, 16
      %v267 = vpop.permute.xlu0 %266
      %268 = vrot.lane.b32.xlu0 %v225, 16
      %v269 = vpop.permute.xlu0 %268
      %270 = vrot.lane.b32.xlu0 %v226, 16
      %v271 = vpop.permute.xlu0 %270
      %272 = vrot.lane.b32.xlu0 %v227, 16
      %v273 = vpop.permute.xlu0 %272
      %274 = vrot.lane.b32.xlu0 %v228, 16
      %v275 = vpop.permute.xlu0 %274
      %276 = vrot.lane.b32.xlu0 %v229, 16
      %v277 = vpop.permute.xlu0 %276
      %294 = vrot.lane.b32.xlu0 %v230, 32
      %v295 = vpop.permute.xlu0 %294
      %296 = vrot.lane.b32.xlu0 %v231, 32
      %v297 = vpop.permute.xlu0 %296
      %298 = vrot.lane.b32.xlu0 %v232, 32
      %v299 = vpop.permute.xlu0 %298
      %300 = vrot.lane.b32.xlu0 %v233, 32
      %v301 = vpop.permute.xlu0 %300
      %302 = vrot.lane.b32.xlu0 %v234, 32
      %v303 = vpop.permute.xlu0 %302
      %304 = vrot.lane.b32.xlu0 %v235, 32
      %v305 = vpop.permute.xlu0 %304
      %306 = vrot.lane.b32.xlu0 %v236, 32
      %v307 = vpop.permute.xlu0 %306
      %308 = vrot.lane.b32.xlu0 %v237, 32
      %v309 = vpop.permute.xlu0 %308
      %326 = vrot.lane.b32.xlu0 %v238, 48
      %v327 = vpop.permute.xlu0 %326
      %328 = vrot.lane.b32.xlu0 %v239, 48
      %v329 = vpop.permute.xlu0 %328
      %330 = vrot.lane.b32.xlu0 %v240, 48
      %v331 = vpop.permute.xlu0 %330
      %332 = vrot.lane.b32.xlu0 %v241, 48
      %v333 = vpop.permute.xlu0 %332
      %334 = vrot.lane.b32.xlu0 %v242, 48
      %v335 = vpop.permute.xlu0 %334
      %336 = vrot.lane.b32.xlu0 %v243, 48
      %v337 = vpop.permute.xlu0 %336
      %338 = vrot.lane.b32.xlu0 %v244, 48
      %v339 = vpop.permute.xlu0 %338
      %340 = vrot.lane.b32.xlu0 %v245, 48
      %v341 = vpop.permute.xlu0 %340
      %358 = vrot.lane.b32.xlu0 %v246, 64
      %v359 = vpop.permute.xlu0 %358
      %360 = vrot.lane.b32.xlu0 %v247, 64
      %v361 = vpop.permute.xlu0 %360
      %362 = vrot.lane.b32.xlu0 %v248, 64
      %v363 = vpop.permute.xlu0 %362
      %364 = vrot.lane.b32.xlu0 %v249, 64
      %v365 = vpop.permute.xlu0 %364
      %366 = vrot.lane.b32.xlu0 %v250, 64
      %v367 = vpop.permute.xlu0 %366
      %368 = vrot.lane.b32.xlu0 %v251, 64
      %v369 = vpop.permute.xlu0 %368
      %370 = vrot.lane.b32.xlu0 %v252, 64
      %v371 = vpop.permute.xlu0 %370
      %372 = vrot.lane.b32.xlu0 %v253, 64
      %v373 = vpop.permute.xlu0 %372
      %vm382 = vcmask 130048
      %v383 = vsel %vm382, %v214, %v263
      %v384 = vsel %vm382, %v215, %v265
      %v385 = vsel %vm382, %v216, %v267
      %v386 = vsel %vm382, %v217, %v269
      %v387 = vsel %vm382, %v218, %v271
      %v388 = vsel %vm382, %v219, %v273
      %v389 = vsel %vm382, %v220, %v275
      %v390 = vsel %vm382, %v221, %v277
      %vm391 = vcmask 261120
      %v392 = vsel %vm391, %v383, %v295
      %v393 = vsel %vm391, %v384, %v297
      %v394 = vsel %vm391, %v385, %v299
      %v395 = vsel %vm391, %v386, %v301
      %v396 = vsel %vm391, %v387, %v303
      %v397 = vsel %vm391, %v388, %v305
      %v398 = vsel %vm391, %v389, %v307
      %v399 = vsel %vm391, %v390, %v309
      %vm400 = vcmask 392192
      %v401 = vsel %vm400, %v392, %v327
      %v402 = vsel %vm400, %v393, %v329
      %v403 = vsel %vm400, %v394, %v331
      %v404 = vsel %vm400, %v395, %v333
      %v405 = vsel %vm400, %v396, %v335
      %v406 = vsel %vm400, %v397, %v337
      %v407 = vsel %vm400, %v398, %v339
      %v408 = vsel %vm400, %v399, %v341
      %vm409 = vcmask 523264
      %v410 = vsel %vm409, %v401, %v359
      %v411 = vsel %vm409, %v402, %v361
      %v412 = vsel %vm409, %v403, %v363
      %v413 = vsel %vm409, %v404, %v365
      %v414 = vsel %vm409, %v405, %v367
      %v415 = vsel %vm409, %v406, %v369
      %v416 = vsel %vm409, %v407, %v371
      %v417 = vsel %vm409, %v408, %v373
      %v418 = vld [vmem:[%s2] sm:$0xff]
      %v419 = vld [vmem:[%s2 + $0x8] sm:$0xff]
      %v420 = vld [vmem:[%s2 + $0x10] sm:$0xff]
      %v422 = vsel %vm409, %v418, 0
      %v425 = vsel %vm409, %v419, 0
      %v428 = vsel %vm409, %v420, 0
      %430 = vmatpush.msra.mxu0 0.0
      %431 = vmatpush.msra.mxu0 0.0
      %432 = vmatpush.msra.mxu0 0.0
      %433 = vmatpush.msra.mxu0 0.0
      %434 = vmatpush.msra.mxu0 0.0
      %435 = vmatpush.msra.mxu0 0.0
      %436 = vmatpush.msra.mxu0 0.0
      %437 = vmatpush.msra.mxu0 0.0
      %438 = vmatpush.msra.mxu0 %v417
      %439 = vmatpush.msra.mxu0 %v416
      %440 = vmatpush.msra.mxu0 %v415
      %441 = vmatpush.msra.mxu0 %v414
      %442 = vmatpush.msra.mxu0 %v413
      %443 = vmatpush.msra.mxu0 %v412
      %444 = vmatpush.msra.mxu0 %v411
      %445 = vmatpush.msra.mxu0 %v410
      %446 = vmatmul.f32.gmra.mxu0 %v422
      %v447 = vpop.f32.mrf.mxu0
      %v448 = vadd.f32 0.0, %v447
      %449 = vmatmul.f32.gmra.mxu0 %v425
      %v450 = vpop.f32.mrf.mxu0
      %v451 = vadd.f32 0.0, %v450
      %452 = vmatmul.f32.gmra.mxu0 %v428
      %v453 = vpop.f32.mrf.mxu0
      %v454 = vadd.f32 0.0, %v453
      %455 = vdwg.mxu0
      %v456 = vld [vmem:[%s3] sm:$0xff]
      %v457 = vld [vmem:[%s3 + $0x8] sm:$0xff]
      %v458 = vld [vmem:[%s3 + $0x10] sm:$0xff]
      %v459 = vld [vmem:[%s3 + $0x18] sm:$0xff]
      %v460 = vld [vmem:[%s3 + $0x20] sm:$0xff]
      %v461 = vld [vmem:[%s3 + $0x28] sm:$0xff]
      %v462 = vld [vmem:[%s3 + $0x30] sm:$0xff]
      %v463 = vld [vmem:[%s3 + $0x38] sm:$0xff]
      %v464 = vld [vmem:[%s3 + $0x40] sm:$0xff]
      %v465 = vld [vmem:[%s3 + $0x48] sm:$0xff]
      %vm466 = vcmask 654336
      %v468 = vsel %vm466, %v448, 0
      %v471 = vsel %vm466, %v451, 0
      %v474 = vsel %vm466, %v454, 0
      %476 = vmatpush.msra.mxu0 0.0
      %477 = vmatpush.msra.mxu0 0.0
      %478 = vmatpush.msra.mxu0 0.0
      %479 = vmatpush.msra.mxu0 0.0
      %480 = vmatpush.msra.mxu0 0.0
      %481 = vmatpush.msra.mxu0 0.0
      %482 = vmatpush.msra.mxu0 %v465
      %483 = vmatpush.msra.mxu0 %v464
      %484 = vmatpush.msra.mxu0 %v463
      %485 = vmatpush.msra.mxu0 %v462
      %486 = vmatpush.msra.mxu0 %v461
      %487 = vmatpush.msra.mxu0 %v460
      %488 = vmatpush.msra.mxu0 %v459
      %489 = vmatpush.msra.mxu0 %v458
      %490 = vmatpush.msra.mxu0 %v457
      %491 = vmatpush.msra.mxu0 %v456
      %492 = vmatmul.f32.gmra.mxu0 %v468
      %v493 = vpop.f32.mrf.mxu0
      %v494 = vadd.f32 0.0, %v493
      %495 = vmatmul.f32.gmra.mxu0 %v471
      %v496 = vpop.f32.mrf.mxu0
      %v497 = vadd.f32 0.0, %v496
      %498 = vmatmul.f32.gmra.mxu0 %v474
      %v499 = vpop.f32.mrf.mxu0
      %v500 = vadd.f32 0.0, %v499
      %501 = vdwg.mxu0
      %v502 = vmul.f32 %v494, %v494
      %v503 = vmul.f32 %v497, %v497
      %v504 = vmul.f32 %v500, %v500
      %508 = vrot.lane.b32.xlu0 %v494, 122
      %v509 = vpop.permute.xlu0 %508
      %510 = vrot.lane.b32.xlu0 %v497, 122
      %v511 = vpop.permute.xlu0 %510
      %512 = vrot.lane.b32.xlu0 %v500, 122
      %v513 = vpop.permute.xlu0 %512
      %v517 = vmul.f32 %v494, %v509
      %v518 = vmul.f32 %v497, %v511
      %v519 = vmul.f32 %v500, %v513
      %523 = vrot.lane.b32.xlu0 %v502, 12
      %v524 = vpop.permute.xlu0 %523
      %525 = vrot.lane.b32.xlu0 %v503, 12
      %v526 = vpop.permute.xlu0 %525
      %527 = vrot.lane.b32.xlu0 %v504, 12
      %v528 = vpop.permute.xlu0 %527
      %v532 = vsub.f32 %v494, %v524
      %v533 = vsub.f32 %v497, %v526
      %v534 = vsub.f32 %v500, %v528
      %538 = vrot.lane.b32.xlu0 %v517, 24
      %v539 = vpop.permute.xlu0 %538
      %540 = vrot.lane.b32.xlu0 %v518, 24
      %v541 = vpop.permute.xlu0 %540
      %542 = vrot.lane.b32.xlu0 %v519, 24
      %v543 = vpop.permute.xlu0 %542
      %v547 = vsub.f32 %v494, %v539
      %v548 = vsub.f32 %v497, %v541
      %v549 = vsub.f32 %v500, %v543
      %v550 = vmul.f32 %v517, 2.0
      %v551 = vmul.f32 %v518, 2.0
      %v552 = vmul.f32 %v519, 2.0
      %v553 = vadd.f32 %v550, 0.0001
      %v554 = vadd.f32 %v551, 0.0001
      %v555 = vadd.f32 %v552, 0.0001
      %v556 = vmul.f32 %v547, 2.0
      %v557 = vmul.f32 %v548, 2.0
      %v558 = vmul.f32 %v549, 2.0
      %v559 = vadd.f32 %v556, 0.0009
      %v560 = vadd.f32 %v557, 0.0009
      %v561 = vadd.f32 %v558, 0.0009
      %565 = vrot.lane.b32.xlu0 %v559, 104
      %v566 = vpop.permute.xlu0 %565
      %567 = vrot.lane.b32.xlu0 %v560, 104
      %v568 = vpop.permute.xlu0 %567
      %569 = vrot.lane.b32.xlu0 %v561, 104
      %v570 = vpop.permute.xlu0 %569
      %v574 = vmul.f32 %v553, %v566
      %v575 = vmul.f32 %v554, %v568
      %v576 = vmul.f32 %v555, %v570
      %577 = vrot.lane.b32.xlu0 %v502, 122
      %v578 = vpop.permute.xlu0 %577
      %579 = vrot.lane.b32.xlu0 %v503, 122
      %v580 = vpop.permute.xlu0 %579
      %581 = vrot.lane.b32.xlu0 %v504, 122
      %v582 = vpop.permute.xlu0 %581
      %v586 = vadd.f32 %v502, %v578
      %v587 = vadd.f32 %v503, %v580
      %v588 = vadd.f32 %v504, %v582
      %v589 = vadd.f32 %v586, 0.0001
      %v590 = vadd.f32 %v587, 0.0001
      %v591 = vadd.f32 %v588, 0.0001
      %595 = vrot.lane.b32.xlu0 %v532, 122
      %v596 = vpop.permute.xlu0 %595
      %597 = vrot.lane.b32.xlu0 %v533, 122
      %v598 = vpop.permute.xlu0 %597
      %599 = vrot.lane.b32.xlu0 %v534, 122
      %v600 = vpop.permute.xlu0 %599
      %v604 = vadd.f32 %v532, %v596
      %v605 = vadd.f32 %v533, %v598
      %v606 = vadd.f32 %v534, %v600
      %v607 = vadd.f32 %v604, 0.0009
      %v608 = vadd.f32 %v605, 0.0009
      %v609 = vadd.f32 %v606, 0.0009
      %613 = vrot.lane.b32.xlu0 %v607, 116
      %v614 = vpop.permute.xlu0 %613
      %615 = vrot.lane.b32.xlu0 %v608, 116
      %v616 = vpop.permute.xlu0 %615
      %617 = vrot.lane.b32.xlu0 %v609, 116
      %v618 = vpop.permute.xlu0 %617
      %v622 = vmul.f32 %v589, %v614
      %v623 = vmul.f32 %v590, %v616
      %v624 = vmul.f32 %v591, %v618
      %v625 = vrcp.pop %v622
      %v626 = vmul.f32 %v622, %v625
      %v627 = vsub.f32 1.0, %v626
      %v628 = vmul.f32 %v625, %v627
      %v629 = vadd.f32 %v625, %v628
      %vm630 = vweird.f32 %v622
      %vm631 = vweird.f32 %v625
      %vm632 = vmor %vm630, %vm631
      %v633 = vsel %vm632, %v625, %v629
      %v634 = vand.u32 2147483647, %v622
      %vm635 = vcmp.eq.f32.partialorder %v634, 8.507059e+37
      %v636 = vand.u32 %v622, 2147483648
      %v637 = vor.u32 1.1754944e-38, %v636
      %v638 = vsel %vm635, %v637, %v633
      %v639 = vrcp.pop %v623
      %v640 = vmul.f32 %v623, %v639
      %v641 = vsub.f32 1.0, %v640
      %v642 = vmul.f32 %v639, %v641
      %v643 = vadd.f32 %v639, %v642
      %vm644 = vweird.f32 %v623
      %vm645 = vweird.f32 %v639
      %vm646 = vmor %vm644, %vm645
      %v647 = vsel %vm646, %v639, %v643
      %v648 = vand.u32 2147483647, %v623
      %vm649 = vcmp.eq.f32.partialorder %v648, 8.507059e+37
      %v650 = vand.u32 %v623, 2147483648
      %v651 = vor.u32 1.1754944e-38, %v650
      %v652 = vsel %vm649, %v651, %v647
      %v653 = vrcp.pop %v624
      %v654 = vmul.f32 %v624, %v653
      %v655 = vsub.f32 1.0, %v654
      %v656 = vmul.f32 %v653, %v655
      %v657 = vadd.f32 %v653, %v656
      %vm658 = vweird.f32 %v624
      %vm659 = vweird.f32 %v653
      %vm660 = vmor %vm658, %vm659
      %v661 = vsel %vm660, %v653, %v657
      %v662 = vand.u32 2147483647, %v624
      %vm663 = vcmp.eq.f32.partialorder %v662, 8.507059e+37
      %v664 = vand.u32 %v624, 2147483648
      %v665 = vor.u32 1.1754944e-38, %v664
      %v666 = vsel %vm663, %v665, %v661
      %v667 = vmul.f32 %v574, %v638
      %v668 = vmul.f32 %v575, %v652
      %v669 = vmul.f32 %v576, %v666
      %vm670 = vcmask 48128
      %v671 = vsel %vm670, %v667, 0.0
      %v672 = vsel %vm670, %v668, 0.0
      %v673 = vadd.f32 %v671, %v672
      %v674 = vsel %vm670, %v669, 0.0
      %v675 = vadd.f32 %v673, %v674
      %676 = vadd.xlane.f32.xlu0 %v675
      %v677 = vpop.xlane.xlu0 %676
      %v678 = vrot.slane %v677, 4
      %v679 = vadd.f32 %v677, %v678
      %v680 = vrot.slane %v679, 2
      %v681 = vadd.f32 %v679, %v680
      %v682 = vrot.slane %v681, 1
      %v683 = vadd.f32 %v681, %v682
      %s684 = vtos %v683
      %v685 = vstv %s684
      %v686 = vmul.f32 %v685, 0.0069444445
      %vm687 = vcmask 0
      %688 = vst.msk [vmem:[%s213] sm:$0x1] %vm687, %v686
      %p689 = scmp.lt.s32.totalorder %s15, 1
      %s690 = scalar_select %p689, %s15, 1
      %s691 = scalar_lea.vmem %s4, %s690
      // Predicated region
      $region37: #{tpu_custom_call.1} parent=35 // pred_check
        %p692 = pneg %p127
      $region38: #{tpu_custom_call.1} parent=35 // pred_check_branch
        %694 = sbr.rel (%p692) target = $region40
      $region39: #{tpu_custom_call.1} parent=35 // pred_region
        _
      $region40: #{tpu_custom_call.1} parent=35 // pred_fallthru
        _
    $region36: #{tpu_custom_call.1} parent=5 // pred_fallthru
      _
    %p695 = scmp.le.s32.totalorder 2, %s10
    // Predicated region
    $region41: #{tpu_custom_call.1} parent=5 // pred_check
      %p696 = pneg %p695
    $region42: #{tpu_custom_call.1} parent=5 // pred_check_branch
      %698 = sbr.rel (%p696) target = $region44
    $region43: #{tpu_custom_call.1} parent=5 // pred_region
      %s699 = ssub.s32 %s10, 2
      // Predicated region
      $region45: #{tpu_custom_call.1} parent=43 // pred_check
        %p700 = pneg %p133
      $region46: #{tpu_custom_call.1} parent=43 // pred_check_branch
        %702 = sbr.rel (%p700) target = $region48
      $region47: #{tpu_custom_call.1} parent=43 // pred_region
        %p703 = scmp.lt.s32.totalorder %s16, 1
        %s704 = scalar_select %p703, %s16, 1
        %s705 = scalar_lea.vmem %s4, %s704
      $region48: #{tpu_custom_call.1} parent=43 // pred_fallthru
        _
    $region44: #{tpu_custom_call.1} parent=5 // pred_fallthru
      _
  $region6: #{tpu_custom_call.1} parent=0 // loop_footer
    %s14 = sadd.s32 1, %s10
  $region7: #{tpu_custom_call.1} parent=0 // loop_footer_branch
    %9 = sbr.rel target = $region3
  $region8: #{tpu_custom_call.1} parent=0 // loop_exit
    _

// kernel: tpu_custom_call.1
$region0: #{tpu_custom_call.1}
  #allocation0 [shape = 'u32[]', space=smem, size = 0x4, offset = 0x4, fixed_abs, tag = 'smem constant byte address 0x4 - core index']
  #allocation1 [shape = 'u32[72,128]{1,0:T(1,128)}', space=vmem, size = 0x9000, scoped, tag = 'internal scratch']
  %s0 = inlined_call_operand.vmem [shape: f32[2,64,16], index: 0, kind: input, shape index: {}]
  %s1 = inlined_call_operand.vmem [shape: f32[2,64,16], index: 1, kind: input, shape index: {}]
  %s2 = inlined_call_operand.vmem [shape: f32[24,64], index: 2, kind: input, shape index: {}]
  %s3 = inlined_call_operand.vmem [shape: f32[80,30], index: 3, kind: input, shape index: {}]
  %s4 = inlined_call_operand.vmem [shape: f32[2,1,1], index: 4, kind: output, shape index: {}]
  %s5 = sld [smem:[#allocation0]]
  $region49: #{tpu_custom_call.1} parent=0
    _
  %s7 = ssub.s32 1, %s5
  %s8 = scalar_select 0, %s7, %s5
  loop: start=0, step=1, limit=4
  $region2: #{tpu_custom_call.1} parent=0 // loop_pre_header
    _
  $region3: #{tpu_custom_call.1} parent=0 // loop_header
    %s10 = sphi 0, %s14
    %p11 = scmp.ge.s32.totalorder %s10, 4
    %s20 = sphi 0, %s22
    %s23 = sphi 0, %s20
    %s24 = sphi 0, %s23
    %s40 = sphi 0, %s24
    %s46 = sphi 0, %s48
    %s49 = sphi 0, %s46
    %s50 = sphi 0, %s49
    %s66 = sphi 0, %s50
    %s70 = sphi 0, %s70
    %s72 = sphi 0, %s70
    %s73 = sphi 0, %s72
    %s87 = sphi 0, %s73
    %s91 = sphi 0, %s91
    %s93 = sphi 0, %s91
    %s94 = sphi 0, %s93
    %s108 = sphi 0, %s94
    %s114 = sphi 0, %s116
    %s117 = sphi 0, %s114
    %s118 = sphi 0, %s117
    %s134 = sphi 0, %s118
  $region4: #{tpu_custom_call.1} parent=0 // loop_header_branch
    %13 = sbr.rel (%p11) target = $region8
  $region5: #{tpu_custom_call.1} parent=0 // loop_body
    %s15 = ssub.s32 %s10, 1
    %s16 = ssub.s32 %s10, 2
    %s17 = sadd.s32 %s10, 1
    %s18 = ssub.s32 %s10, %s17
    %p19 = scmp.eq.s32.totalorder %s18, 0
    %s21 = sadd.s32 %s20, 1
    %s22 = scalar_select %p19, %s20, %s21
    %p25 = pneg %p19
    %p26 = scmp.eq.s32.totalorder %s10, 1
    %p27 = por %p25, %p26
    %p28 = scmp.ne.s32.totalorder %s20, %s23
    %p29 = scmp.eq.s32.totalorder %s10, 0
    %p30 = por %p28, %p29
    %p31 = scmp.ne.s32.totalorder %s20, %s23
    %p32 = scmp.eq.s32.totalorder %s15, 1
    %p33 = por %p31, %p32
    %p34 = scmp.ne.s32.totalorder %s23, %s24
    %p35 = scmp.eq.s32.totalorder %s15, 0
    %p36 = por %p34, %p35
    %p37 = scmp.ne.s32.totalorder %s23, %s24
    %p38 = scmp.eq.s32.totalorder %s16, 1
    %p39 = por %p37, %p38
    %p41 = scmp.ne.s32.totalorder %s24, %s40
    %p42 = scmp.eq.s32.totalorder %s16, 0
    %p43 = por %p41, %p42
    %s44 = ssub.s32 %s10, %s17
    %p45 = scmp.eq.s32.totalorder %s44, 0
    %s47 = sadd.s32 %s46, 1
    %s48 = scalar_select %p45, %s46, %s47
    %p51 = pneg %p45
    %p52 = scmp.eq.s32.totalorder %s10, 1
    %p53 = por %p51, %p52
    %p54 = scmp.ne.s32.totalorder %s46, %s49
    %p55 = scmp.eq.s32.totalorder %s10, 0
    %p56 = por %p54, %p55
    %p57 = scmp.ne.s32.totalorder %s46, %s49
    %p58 = scmp.eq.s32.totalorder %s15, 1
    %p59 = por %p57, %p58
    %p60 = scmp.ne.s32.totalorder %s49, %s50
    %p61 = scmp.eq.s32.totalorder %s15, 0
    %p62 = por %p60, %p61
    %p63 = scmp.ne.s32.totalorder %s49, %s50
    %p64 = scmp.eq.s32.totalorder %s16, 1
    %p65 = por %p63, %p64
    %p67 = scmp.ne.s32.totalorder %s50, %s66
    %p68 = scmp.eq.s32.totalorder %s16, 0
    %p69 = por %p67, %p68
    %s71 = sadd.s32 %s70, 1
    %p74 = scmp.eq.s32.totalorder %s10, 1
    %p75 = scmp.ne.s32.totalorder %s70, %s72
    %p76 = scmp.eq.s32.totalorder %s10, 0
    %p77 = por %p75, %p76
    %p78 = scmp.ne.s32.totalorder %s70, %s72
    %p79 = scmp.eq.s32.totalorder %s15, 1
    %p80 = por %p78, %p79
    %p81 = scmp.ne.s32.totalorder %s72, %s73
    %p82 = scmp.eq.s32.totalorder %s15, 0
    %p83 = por %p81, %p82
    %p84 = scmp.ne.s32.totalorder %s72, %s73
    %p85 = scmp.eq.s32.totalorder %s16, 1
    %p86 = por %p84, %p85
    %p88 = scmp.ne.s32.totalorder %s73, %s87
    %p89 = scmp.eq.s32.totalorder %s16, 0
    %p90 = por %p88, %p89
    %s92 = sadd.s32 %s91, 1
    %p95 = scmp.eq.s32.totalorder %s10, 1
    %p96 = scmp.ne.s32.totalorder %s91, %s93
    %p97 = scmp.eq.s32.totalorder %s10, 0
    %p98 = por %p96, %p97
    %p99 = scmp.ne.s32.totalorder %s91, %s93
    %p100 = scmp.eq.s32.totalorder %s15, 1
    %p101 = por %p99, %p100
    %p102 = scmp.ne.s32.totalorder %s93, %s94
    %p103 = scmp.eq.s32.totalorder %s15, 0
    %p104 = por %p102, %p103
    %p105 = scmp.ne.s32.totalorder %s93, %s94
    %p106 = scmp.eq.s32.totalorder %s16, 1
    %p107 = por %p105, %p106
    %p109 = scmp.ne.s32.totalorder %s94, %s108
    %p110 = scmp.eq.s32.totalorder %s16, 0
    %p111 = por %p109, %p110
    %s112 = ssub.s32 %s10, %s17
    %p113 = scmp.eq.s32.totalorder %s112, 0
    %s115 = sadd.s32 %s114, 1
    %s116 = scalar_select %p113, %s114, %s115
    %p119 = pneg %p113
    %p120 = scmp.eq.s32.totalorder %s10, 1
    %p121 = por %p119, %p120
    %p122 = scmp.ne.s32.totalorder %s114, %s117
    %p123 = scmp.eq.s32.totalorder %s10, 0
    %p124 = por %p122, %p123
    %p125 = scmp.ne.s32.totalorder %s114, %s117
    %p126 = scmp.eq.s32.totalorder %s15, 1
    %p127 = por %p125, %p126
    %p128 = scmp.ne.s32.totalorder %s117, %s118
    %p129 = scmp.eq.s32.totalorder %s15, 0
    %p130 = por %p128, %p129
    %p131 = scmp.ne.s32.totalorder %s117, %s118
    %p132 = scmp.eq.s32.totalorder %s16, 1
    %p133 = por %p131, %p132
    %p135 = scmp.ne.s32.totalorder %s118, %s134
    %p136 = scmp.eq.s32.totalorder %s16, 0
    %p137 = por %p135, %p136
    %p138 = scmp.le.s32.totalorder 1, %s10
    %p139 = scmp.lt.s32.totalorder %s10, 3
    %p140 = pnand %p138, %p139
    %p141 = pneg %p140
    // Predicated region
    $region9: #{tpu_custom_call.1} parent=5 // pred_check
      _
    $region10: #{tpu_custom_call.1} parent=5 // pred_check_branch
      %143 = sbr.rel (%p140) target = $region12
    $region11: #{tpu_custom_call.1} parent=5 // pred_region
      %s144 = ssub.s32 %s10, 1
      // Predicated region
      $region13: #{tpu_custom_call.1} parent=11 // pred_check
        %p145 = pneg %p83
      $region14: #{tpu_custom_call.1} parent=11 // pred_check_branch
        %147 = sbr.rel (%p145) target = $region16
      $region15: #{tpu_custom_call.1} parent=11 // pred_region
        _
      $region16: #{tpu_custom_call.1} parent=11 // pred_fallthru
        _
      // Predicated region
      $region17: #{tpu_custom_call.1} parent=11 // pred_check
        %p148 = pneg %p104
      $region18: #{tpu_custom_call.1} parent=11 // pred_check_branch
        %150 = sbr.rel (%p148) target = $region20
      $region19: #{tpu_custom_call.1} parent=11 // pred_region
        _
      $region20: #{tpu_custom_call.1} parent=11 // pred_fallthru
        _
    $region12: #{tpu_custom_call.1} parent=5 // pred_fallthru
      _
    %p151 = scmp.lt.s32.totalorder %s10, 2
    // Predicated region
    $region21: #{tpu_custom_call.1} parent=5 // pred_check
      %p152 = pneg %p151
    $region22: #{tpu_custom_call.1} parent=5 // pred_check_branch
      %154 = sbr.rel (%p152) target = $region24
    $region23: #{tpu_custom_call.1} parent=5 // pred_region
      // Predicated region
      $region25: #{tpu_custom_call.1} parent=23 // pred_check
        %p155 = pneg %p30
      $region26: #{tpu_custom_call.1} parent=23 // pred_check_branch
        %157 = sbr.rel (%p155) target = $region28
      $region27: #{tpu_custom_call.1} parent=23 // pred_region
        %p158 = scmp.lt.s32.totalorder %s10, 1
        %s159 = scalar_select %p158, %s10, 1
        %s160 = smul.addr %s159, 8
        %s161 = smul.addr %s160, 8
        %s162 = scalar_lea.vmem %s0, %s161
      $region28: #{tpu_custom_call.1} parent=23 // pred_fallthru
        _
      // Predicated region
      $region29: #{tpu_custom_call.1} parent=23 // pred_check
        %p163 = pneg %p56
      $region30: #{tpu_custom_call.1} parent=23 // pred_check_branch
        %165 = sbr.rel (%p163) target = $region32
      $region31: #{tpu_custom_call.1} parent=23 // pred_region
        %p166 = scmp.lt.s32.totalorder %s10, 1
        %s167 = scalar_select %p166, %s10, 1
        %s168 = smul.addr %s167, 8
        %s169 = smul.addr %s168, 8
        %s170 = scalar_lea.vmem %s1, %s169
      $region32: #{tpu_custom_call.1} parent=23 // pred_fallthru
        _
    $region24: #{tpu_custom_call.1} parent=5 // pred_fallthru
      _
    %p171 = scmp.le.s32.totalorder 1, %s10
    %p172 = scmp.lt.s32.totalorder %s10, 3
    %p173 = pnand %p171, %p172
    %p174 = pneg %p173
    // Predicated region
    $region33: #{tpu_custom_call.1} parent=5 // pred_check
      _
    $region34: #{tpu_custom_call.1} parent=5 // pred_check_branch
      %176 = sbr.rel (%p173) target = $region36
    $region35: #{tpu_custom_call.1} parent=5 // pred_region
      %s177 = ssub.s32 %s10, 1
      %p178 = scmp.lt.s32.totalorder %s15, 1
      %s179 = scalar_select %p178, %s15, 1
      %s180 = smul.addr %s179, 8
      %s181 = smul.addr %s180, 8
      %s182 = scalar_lea.vmem %s0, %s181
      %p183 = pneg %p36
      %p184 = pneg %p33
      %p185 = scmp.lt.s32.totalorder %s15, 1
      %s186 = scalar_select %p185, %s15, 1
      %s187 = smul.addr %s186, 8
      %s188 = smul.addr %s187, 8
      %s189 = scalar_lea.vmem %s1, %s188
      %p190 = pneg %p62
      %p191 = pneg %p59
      %p192 = pneg %p83
      %p193 = pneg %p80
      %p194 = pneg %p104
      %p195 = pneg %p101
      %p196 = pneg %p130
      %p197 = pneg %p127
      %p198 = scmp.lt.s32.totalorder %s15, 1
      %s199 = scalar_select %p198, %s15, 1
      %s200 = scalar_lea.vmem %s4, %s199
      %p201 = scmp.lt.s32.totalorder %s15, 1
      %s202 = scalar_select %p201, %s15, 1
      %s203 = smul.addr %s202, 8
      %s204 = smul.addr %s203, 8
      %s205 = scalar_lea.vmem %s0, %s204
      %p206 = scmp.lt.s32.totalorder %s15, 1
      %s207 = scalar_select %p206, %s15, 1
      %s208 = smul.addr %s207, 8
      %s209 = smul.addr %s208, 8
      %s210 = scalar_lea.vmem %s1, %s209
      %p211 = scmp.lt.s32.totalorder %s15, 1
      %s212 = scalar_select %p211, %s15, 1
      %s213 = scalar_lea.vmem %s4, %s212
      %v214 = vld [vmem:[%s205] sm:$0xff]
      %v215 = vld [vmem:[%s205 + $0x8] sm:$0xff]
      %v216 = vld [vmem:[%s205 + $0x10] sm:$0xff]
      %v217 = vld [vmem:[%s205 + $0x18] sm:$0xff]
      %v218 = vld [vmem:[%s205 + $0x20] sm:$0xff]
      %v219 = vld [vmem:[%s205 + $0x28] sm:$0xff]
      %v220 = vld [vmem:[%s205 + $0x30] sm:$0xff]
      %v221 = vld [vmem:[%s205 + $0x38] sm:$0xff]
      %v222 = vld [vmem:[%s210] sm:$0xff]
      %v223 = vld [vmem:[%s210 + $0x8] sm:$0xff]
      %v224 = vld [vmem:[%s210 + $0x10] sm:$0xff]
      %v225 = vld [vmem:[%s210 + $0x18] sm:$0xff]
      %v226 = vld [vmem:[%s210 + $0x20] sm:$0xff]
      %v227 = vld [vmem:[%s210 + $0x28] sm:$0xff]
      %v228 = vld [vmem:[%s210 + $0x30] sm:$0xff]
      %v229 = vld [vmem:[%s210 + $0x38] sm:$0xff]
      %v230 = vmul.f32 %v214, %v214
      %v231 = vmul.f32 %v215, %v215
      %v232 = vmul.f32 %v216, %v216
      %v233 = vmul.f32 %v217, %v217
      %v234 = vmul.f32 %v218, %v218
      %v235 = vmul.f32 %v219, %v219
      %v236 = vmul.f32 %v220, %v220
      %v237 = vmul.f32 %v221, %v221
      %v238 = vmul.f32 %v222, %v222
      %v239 = vmul.f32 %v223, %v223
      %v240 = vmul.f32 %v224, %v224
      %v241 = vmul.f32 %v225, %v225
      %v242 = vmul.f32 %v226, %v226
      %v243 = vmul.f32 %v227, %v227
      %v244 = vmul.f32 %v228, %v228
      %v245 = vmul.f32 %v229, %v229
      %v246 = vmul.f32 %v214, %v222
      %v247 = vmul.f32 %v215, %v223
      %v248 = vmul.f32 %v216, %v224
      %v249 = vmul.f32 %v217, %v225
      %v250 = vmul.f32 %v218, %v226
      %v251 = vmul.f32 %v219, %v227
      %v252 = vmul.f32 %v220, %v228
      %v253 = vmul.f32 %v221, %v229
      %262 = vrot.lane.b32.xlu0 %v222, 16
      %v263 = vpop.permute.xlu0 %262
      %264 = vrot.lane.b32.xlu0 %v223, 16
      %v265 = vpop.permute.xlu0 %264
      %266 = vrot.lane.b32.xlu0 %v224, 16
      %v267 = vpop.permute.xlu0 %266
      %268 = vrot.lane.b32.xlu0 %v225, 16
      %v269 = vpop.permute.xlu0 %268
      %270 = vrot.lane.b32.xlu0 %v226, 16
      %v271 = vpop.permute.xlu0 %270
      %272 = vrot.lane.b32.xlu0 %v227, 16
      %v273 = vpop.permute.xlu0 %272
      %274 = vrot.lane.b32.xlu0 %v228, 16
      %v275 = vpop.permute.xlu0 %274
      %276 = vrot.lane.b32.xlu0 %v229, 16
      %v277 = vpop.permute.xlu0 %276
      %294 = vrot.lane.b32.xlu0 %v230, 32
      %v295 = vpop.permute.xlu0 %294
      %296 = vrot.lane.b32.xlu0 %v231, 32
      %v297 = vpop.permute.xlu0 %296
      %298 = vrot.lane.b32.xlu0 %v232, 32
      %v299 = vpop.permute.xlu0 %298
      %300 = vrot.lane.b32.xlu0 %v233, 32
      %v301 = vpop.permute.xlu0 %300
      %302 = vrot.lane.b32.xlu0 %v234, 32
      %v303 = vpop.permute.xlu0 %302
      %304 = vrot.lane.b32.xlu0 %v235, 32
      %v305 = vpop.permute.xlu0 %304
      %306 = vrot.lane.b32.xlu0 %v236, 32
      %v307 = vpop.permute.xlu0 %306
      %308 = vrot.lane.b32.xlu0 %v237, 32
      %v309 = vpop.permute.xlu0 %308
      %326 = vrot.lane.b32.xlu0 %v238, 48
      %v327 = vpop.permute.xlu0 %326
      %328 = vrot.lane.b32.xlu0 %v239, 48
      %v329 = vpop.permute.xlu0 %328
      %330 = vrot.lane.b32.xlu0 %v240, 48
      %v331 = vpop.permute.xlu0 %330
      %332 = vrot.lane.b32.xlu0 %v241, 48
      %v333 = vpop.permute.xlu0 %332
      %334 = vrot.lane.b32.xlu0 %v242, 48
      %v335 = vpop.permute.xlu0 %334
      %336 = vrot.lane.b32.xlu0 %v243, 48
      %v337 = vpop.permute.xlu0 %336
      %338 = vrot.lane.b32.xlu0 %v244, 48
      %v339 = vpop.permute.xlu0 %338
      %340 = vrot.lane.b32.xlu0 %v245, 48
      %v341 = vpop.permute.xlu0 %340
      %358 = vrot.lane.b32.xlu0 %v246, 64
      %v359 = vpop.permute.xlu0 %358
      %360 = vrot.lane.b32.xlu0 %v247, 64
      %v361 = vpop.permute.xlu0 %360
      %362 = vrot.lane.b32.xlu0 %v248, 64
      %v363 = vpop.permute.xlu0 %362
      %364 = vrot.lane.b32.xlu0 %v249, 64
      %v365 = vpop.permute.xlu0 %364
      %366 = vrot.lane.b32.xlu0 %v250, 64
      %v367 = vpop.permute.xlu0 %366
      %368 = vrot.lane.b32.xlu0 %v251, 64
      %v369 = vpop.permute.xlu0 %368
      %370 = vrot.lane.b32.xlu0 %v252, 64
      %v371 = vpop.permute.xlu0 %370
      %372 = vrot.lane.b32.xlu0 %v253, 64
      %v373 = vpop.permute.xlu0 %372
      %vm382 = vcmask 130048
      %v383 = vsel %vm382, %v214, %v263
      %v384 = vsel %vm382, %v215, %v265
      %v385 = vsel %vm382, %v216, %v267
      %v386 = vsel %vm382, %v217, %v269
      %v387 = vsel %vm382, %v218, %v271
      %v388 = vsel %vm382, %v219, %v273
      %v389 = vsel %vm382, %v220, %v275
      %v390 = vsel %vm382, %v221, %v277
      %vm391 = vcmask 261120
      %v392 = vsel %vm391, %v383, %v295
      %v393 = vsel %vm391, %v384, %v297
      %v394 = vsel %vm391, %v385, %v299
      %v395 = vsel %vm391, %v386, %v301
      %v396 = vsel %vm391, %v387, %v303
      %v397 = vsel %vm391, %v388, %v305
      %v398 = vsel %vm391, %v389, %v307
      %v399 = vsel %vm391, %v390, %v309
      %vm400 = vcmask 392192
      %v401 = vsel %vm400, %v392, %v327
      %v402 = vsel %vm400, %v393, %v329
      %v403 = vsel %vm400, %v394, %v331
      %v404 = vsel %vm400, %v395, %v333
      %v405 = vsel %vm400, %v396, %v335
      %v406 = vsel %vm400, %v397, %v337
      %v407 = vsel %vm400, %v398, %v339
      %v408 = vsel %vm400, %v399, %v341
      %vm409 = vcmask 523264
      %v410 = vsel %vm409, %v401, %v359
      %v411 = vsel %vm409, %v402, %v361
      %v412 = vsel %vm409, %v403, %v363
      %v413 = vsel %vm409, %v404, %v365
      %v414 = vsel %vm409, %v405, %v367
      %v415 = vsel %vm409, %v406, %v369
      %v416 = vsel %vm409, %v407, %v371
      %v417 = vsel %vm409, %v408, %v373
      %v418 = vld [vmem:[%s2] sm:$0xff]
      %v419 = vld [vmem:[%s2 + $0x8] sm:$0xff]
      %v420 = vld [vmem:[%s2 + $0x10] sm:$0xff]
      %v422 = vsel %vm409, %v418, 0
      %v425 = vsel %vm409, %v419, 0
      %v428 = vsel %vm409, %v420, 0
      %430 = vmatpush.msra.mxu0 0.0
      %431 = vmatpush.msra.mxu0 0.0
      %432 = vmatpush.msra.mxu0 0.0
      %433 = vmatpush.msra.mxu0 0.0
      %434 = vmatpush.msra.mxu0 0.0
      %435 = vmatpush.msra.mxu0 0.0
      %436 = vmatpush.msra.mxu0 0.0
      %437 = vmatpush.msra.mxu0 0.0
      %438 = vmatpush.msra.mxu0 %v417
      %439 = vmatpush.msra.mxu0 %v416
      %440 = vmatpush.msra.mxu0 %v415
      %441 = vmatpush.msra.mxu0 %v414
      %442 = vmatpush.msra.mxu0 %v413
      %443 = vmatpush.msra.mxu0 %v412
      %444 = vmatpush.msra.mxu0 %v411
      %445 = vmatpush.msra.mxu0 %v410
      %446 = vmatmul.f32.gmra.mxu0 %v422
      %v447 = vpop.f32.mrf.mxu0
      %v448 = vadd.f32 0.0, %v447
      %449 = vmatmul.f32.gmra.mxu0 %v425
      %v450 = vpop.f32.mrf.mxu0
      %v451 = vadd.f32 0.0, %v450
      %452 = vmatmul.f32.gmra.mxu0 %v428
      %v453 = vpop.f32.mrf.mxu0
      %v454 = vadd.f32 0.0, %v453
      %455 = vdwg.mxu0
      %v456 = vld [vmem:[%s3] sm:$0xff]
      %v457 = vld [vmem:[%s3 + $0x8] sm:$0xff]
      %v458 = vld [vmem:[%s3 + $0x10] sm:$0xff]
      %v459 = vld [vmem:[%s3 + $0x18] sm:$0xff]
      %v460 = vld [vmem:[%s3 + $0x20] sm:$0xff]
      %v461 = vld [vmem:[%s3 + $0x28] sm:$0xff]
      %v462 = vld [vmem:[%s3 + $0x30] sm:$0xff]
      %v463 = vld [vmem:[%s3 + $0x38] sm:$0xff]
      %v464 = vld [vmem:[%s3 + $0x40] sm:$0xff]
      %v465 = vld [vmem:[%s3 + $0x48] sm:$0xff]
      %vm466 = vcmask 654336
      %v468 = vsel %vm466, %v448, 0
      %v471 = vsel %vm466, %v451, 0
      %v474 = vsel %vm466, %v454, 0
      %476 = vmatpush.msra.mxu0 0.0
      %477 = vmatpush.msra.mxu0 0.0
      %478 = vmatpush.msra.mxu0 0.0
      %479 = vmatpush.msra.mxu0 0.0
      %480 = vmatpush.msra.mxu0 0.0
      %481 = vmatpush.msra.mxu0 0.0
      %482 = vmatpush.msra.mxu0 %v465
      %483 = vmatpush.msra.mxu0 %v464
      %484 = vmatpush.msra.mxu0 %v463
      %485 = vmatpush.msra.mxu0 %v462
      %486 = vmatpush.msra.mxu0 %v461
      %487 = vmatpush.msra.mxu0 %v460
      %488 = vmatpush.msra.mxu0 %v459
      %489 = vmatpush.msra.mxu0 %v458
      %490 = vmatpush.msra.mxu0 %v457
      %491 = vmatpush.msra.mxu0 %v456
      %492 = vmatmul.f32.gmra.mxu0 %v468
      %v493 = vpop.f32.mrf.mxu0
      %v494 = vadd.f32 0.0, %v493
      %495 = vmatmul.f32.gmra.mxu0 %v471
      %v496 = vpop.f32.mrf.mxu0
      %v497 = vadd.f32 0.0, %v496
      %498 = vmatmul.f32.gmra.mxu0 %v474
      %v499 = vpop.f32.mrf.mxu0
      %v500 = vadd.f32 0.0, %v499
      %501 = vdwg.mxu0
      %v502 = vmul.f32 %v494, %v494
      %v503 = vmul.f32 %v497, %v497
      %v504 = vmul.f32 %v500, %v500
      %508 = vrot.lane.b32.xlu0 %v494, 122
      %v509 = vpop.permute.xlu0 %508
      %510 = vrot.lane.b32.xlu0 %v497, 122
      %v511 = vpop.permute.xlu0 %510
      %512 = vrot.lane.b32.xlu0 %v500, 122
      %v513 = vpop.permute.xlu0 %512
      %v517 = vmul.f32 %v494, %v509
      %v518 = vmul.f32 %v497, %v511
      %v519 = vmul.f32 %v500, %v513
      %523 = vrot.lane.b32.xlu0 %v502, 12
      %v524 = vpop.permute.xlu0 %523
      %525 = vrot.lane.b32.xlu0 %v503, 12
      %v526 = vpop.permute.xlu0 %525
      %527 = vrot.lane.b32.xlu0 %v504, 12
      %v528 = vpop.permute.xlu0 %527
      %v532 = vsub.f32 %v494, %v524
      %v533 = vsub.f32 %v497, %v526
      %v534 = vsub.f32 %v500, %v528
      %538 = vrot.lane.b32.xlu0 %v517, 24
      %v539 = vpop.permute.xlu0 %538
      %540 = vrot.lane.b32.xlu0 %v518, 24
      %v541 = vpop.permute.xlu0 %540
      %542 = vrot.lane.b32.xlu0 %v519, 24
      %v543 = vpop.permute.xlu0 %542
      %v547 = vsub.f32 %v494, %v539
      %v548 = vsub.f32 %v497, %v541
      %v549 = vsub.f32 %v500, %v543
      %v550 = vmul.f32 %v517, 2.0
      %v551 = vmul.f32 %v518, 2.0
      %v552 = vmul.f32 %v519, 2.0
      %v553 = vadd.f32 %v550, 0.0001
      %v554 = vadd.f32 %v551, 0.0001
      %v555 = vadd.f32 %v552, 0.0001
      %v556 = vmul.f32 %v547, 2.0
      %v557 = vmul.f32 %v548, 2.0
      %v558 = vmul.f32 %v549, 2.0
      %v559 = vadd.f32 %v556, 0.0009
      %v560 = vadd.f32 %v557, 0.0009
      %v561 = vadd.f32 %v558, 0.0009
      %565 = vrot.lane.b32.xlu0 %v559, 104
      %v566 = vpop.permute.xlu0 %565
      %567 = vrot.lane.b32.xlu0 %v560, 104
      %v568 = vpop.permute.xlu0 %567
      %569 = vrot.lane.b32.xlu0 %v561, 104
      %v570 = vpop.permute.xlu0 %569
      %v574 = vmul.f32 %v553, %v566
      %v575 = vmul.f32 %v554, %v568
      %v576 = vmul.f32 %v555, %v570
      %577 = vrot.lane.b32.xlu0 %v502, 122
      %v578 = vpop.permute.xlu0 %577
      %579 = vrot.lane.b32.xlu0 %v503, 122
      %v580 = vpop.permute.xlu0 %579
      %581 = vrot.lane.b32.xlu0 %v504, 122
      %v582 = vpop.permute.xlu0 %581
      %v586 = vadd.f32 %v502, %v578
      %v587 = vadd.f32 %v503, %v580
      %v588 = vadd.f32 %v504, %v582
      %v589 = vadd.f32 %v586, 0.0001
      %v590 = vadd.f32 %v587, 0.0001
      %v591 = vadd.f32 %v588, 0.0001
      %595 = vrot.lane.b32.xlu0 %v532, 122
      %v596 = vpop.permute.xlu0 %595
      %597 = vrot.lane.b32.xlu0 %v533, 122
      %v598 = vpop.permute.xlu0 %597
      %599 = vrot.lane.b32.xlu0 %v534, 122
      %v600 = vpop.permute.xlu0 %599
      %v604 = vadd.f32 %v532, %v596
      %v605 = vadd.f32 %v533, %v598
      %v606 = vadd.f32 %v534, %v600
      %v607 = vadd.f32 %v604, 0.0009
      %v608 = vadd.f32 %v605, 0.0009
      %v609 = vadd.f32 %v606, 0.0009
      %613 = vrot.lane.b32.xlu0 %v607, 116
      %v614 = vpop.permute.xlu0 %613
      %615 = vrot.lane.b32.xlu0 %v608, 116
      %v616 = vpop.permute.xlu0 %615
      %617 = vrot.lane.b32.xlu0 %v609, 116
      %v618 = vpop.permute.xlu0 %617
      %v622 = vmul.f32 %v589, %v614
      %v623 = vmul.f32 %v590, %v616
      %v624 = vmul.f32 %v591, %v618
      %v625 = vrcp.pop %v622
      %v626 = vmul.f32 %v622, %v625
      %v627 = vsub.f32 1.0, %v626
      %v628 = vmul.f32 %v625, %v627
      %v629 = vadd.f32 %v625, %v628
      %vm630 = vweird.f32 %v622
      %vm631 = vweird.f32 %v625
      %vm632 = vmor %vm630, %vm631
      %v633 = vsel %vm632, %v625, %v629
      %v634 = vand.u32 2147483647, %v622
      %vm635 = vcmp.eq.f32.partialorder %v634, 8.507059e+37
      %v636 = vand.u32 %v622, 2147483648
      %v637 = vor.u32 1.1754944e-38, %v636
      %v638 = vsel %vm635, %v637, %v633
      %v639 = vrcp.pop %v623
      %v640 = vmul.f32 %v623, %v639
      %v641 = vsub.f32 1.0, %v640
      %v642 = vmul.f32 %v639, %v641
      %v643 = vadd.f32 %v639, %v642
      %vm644 = vweird.f32 %v623
      %vm645 = vweird.f32 %v639
      %vm646 = vmor %vm644, %vm645
      %v647 = vsel %vm646, %v639, %v643
      %v648 = vand.u32 2147483647, %v623
      %vm649 = vcmp.eq.f32.partialorder %v648, 8.507059e+37
      %v650 = vand.u32 %v623, 2147483648
      %v651 = vor.u32 1.1754944e-38, %v650
      %v652 = vsel %vm649, %v651, %v647
      %v653 = vrcp.pop %v624
      %v654 = vmul.f32 %v624, %v653
      %v655 = vsub.f32 1.0, %v654
      %v656 = vmul.f32 %v653, %v655
      %v657 = vadd.f32 %v653, %v656
      %vm658 = vweird.f32 %v624
      %vm659 = vweird.f32 %v653
      %vm660 = vmor %vm658, %vm659
      %v661 = vsel %vm660, %v653, %v657
      %v662 = vand.u32 2147483647, %v624
      %vm663 = vcmp.eq.f32.partialorder %v662, 8.507059e+37
      %v664 = vand.u32 %v624, 2147483648
      %v665 = vor.u32 1.1754944e-38, %v664
      %v666 = vsel %vm663, %v665, %v661
      %v667 = vmul.f32 %v574, %v638
      %v668 = vmul.f32 %v575, %v652
      %v669 = vmul.f32 %v576, %v666
      %vm670 = vcmask 48128
      %v671 = vsel %vm670, %v667, 0.0
      %v672 = vsel %vm670, %v668, 0.0
      %v673 = vadd.f32 %v671, %v672
      %v674 = vsel %vm670, %v669, 0.0
      %v675 = vadd.f32 %v673, %v674
      %676 = vadd.xlane.f32.xlu0 %v675
      %v677 = vpop.xlane.xlu0 %676
      %v678 = vrot.slane %v677, 4
      %v679 = vadd.f32 %v677, %v678
      %v680 = vrot.slane %v679, 2
      %v681 = vadd.f32 %v679, %v680
      %v682 = vrot.slane %v681, 1
      %v683 = vadd.f32 %v681, %v682
      %s684 = vtos %v683
      %v685 = vstv %s684
      %v686 = vmul.f32 %v685, 0.0069444445
      %vm687 = vcmask 0
      %688 = vst.msk [vmem:[%s213] sm:$0x1] %vm687, %v686
      %p689 = scmp.lt.s32.totalorder %s15, 1
      %s690 = scalar_select %p689, %s15, 1
      %s691 = scalar_lea.vmem %s4, %s690
      // Predicated region
      $region37: #{tpu_custom_call.1} parent=35 // pred_check
        %p692 = pneg %p127
      $region38: #{tpu_custom_call.1} parent=35 // pred_check_branch
        %694 = sbr.rel (%p692) target = $region40
      $region39: #{tpu_custom_call.1} parent=35 // pred_region
        _
      $region40: #{tpu_custom_call.1} parent=35 // pred_fallthru
        _
    $region36: #{tpu_custom_call.1} parent=5 // pred_fallthru
      _
    %p695 = scmp.le.s32.totalorder 2, %s10
    // Predicated region
    $region41: #{tpu_custom_call.1} parent=5 // pred_check
      %p696 = pneg %p695
    $region42: #{tpu_custom_call.1} parent=5 // pred_check_branch
      %698 = sbr.rel (%p696) target = $region44
    $region43: #{tpu_custom_call.1} parent=5 // pred_region
      %s699 = ssub.s32 %s10, 2
      // Predicated region
      $region45: #{tpu_custom_call.1} parent=43 // pred_check
        %p700 = pneg %p133
      $region46: #{tpu_custom_call.1} parent=43 // pred_check_branch
        %702 = sbr.rel (%p700) target = $region48
      $region47: #{tpu_custom_call.1} parent=43 // pred_region
        %p703 = scmp.lt.s32.totalorder %s16, 1
        %s704 = scalar_select %p703, %s16, 1
        %s705 = scalar_lea.vmem %s4, %s704
      $region48: #{tpu_custom_call.1} parent=43 // pred_fallthru
        _
    $region44: #{tpu_custom_call.1} parent=5 // pred_fallthru
      _
  $region6: #{tpu_custom_call.1} parent=0 // loop_footer
    %s14 = sadd.s32 1, %s10
  $region7: #{tpu_custom_call.1} parent=0 // loop_footer_branch
    %9 = sbr.rel target = $region3
  $region8: #{tpu_custom_call.1} parent=0 // loop_exit
    _

</llo_original>
